<compile_context>
chip_gen: v5e
topology: v5e:2x2
jax: 0.10.0
libtpu: 0.0.40
codegen_flags: <defaults>
</compile_context>

<pallas_src>
import jax
import jax.numpy as jnp
import numpy as np
from jax.experimental import pallas as pl
from jax.experimental.pallas import tpu as pltpu

PARAM = {
    "input_dim": 32,
    "hidden1_dim": 32,
    "hidden2_dim": 16,
}
N_NODES = 16   # nodes per graph (X.size(0) in the torch module)
BATCH = 2      # number of graphs processed in one pallas_call

LANE = 128     # TPU vreg lane width


def round_up(x, m):
    return ((x + m - 1) // m) * m


def glorot_init(key, input_dim, output_dim):
    """Deterministic equivalent of the torch glorot_init (uniform in +/- range)."""
    init_range = np.sqrt(6.0 / (input_dim + output_dim))
    return jax.random.uniform(
        key, (input_dim, output_dim), dtype=jnp.float32,
        minval=-init_range, maxval=init_range)


def vgae_kernel(x_ref, adj_ref, w0_ref, wms_ref, noise_ref, a_ref):
    """Full VGAE forward for the whole (padded) batch in one invocation.

    hidden          = relu(adj @ (X @ W0))
    [mean | logstd] = adj @ (hidden @ [Wm | Ws])   # fused, vreg-aligned split
    Z               = noise * exp(logstd) + mean
    A_pred          = sigmoid(Z @ Z.T)             # last-axis contraction
    """
    b, n_p, d_p = x_ref.shape
    h1_p = w0_ref.shape[1]
    h2_p = noise_ref.shape[-1]
    bf16, f32 = jnp.bfloat16, jnp.float32

    adj = adj_ref[...].astype(bf16)                       # reused by both adj matmuls

    # --- base GCN layer: fold batch into sublanes for the shared-weight matmul ---
    x2 = x_ref[...].reshape(b * n_p, d_p).astype(bf16)    # [B*N, Dp]
    xw = jnp.dot(x2, w0_ref[...].astype(bf16),
                 preferred_element_type=f32)              # [B*N, H1p]
    xw = xw.reshape(b, n_p, h1_p).astype(bf16)
    hidden = jnp.maximum(
        jnp.einsum("bij,bjk->bik", adj, xw, preferred_element_type=f32), 0.0)

    # --- fused mean/logstd GCN layers (identity activation) ---
    hid2 = hidden.reshape(b * n_p, h1_p).astype(bf16)     # fold batch into M again
    hms = jnp.dot(hid2, wms_ref[...].astype(bf16),
                  preferred_element_type=f32)             # [B*N, 2*H2p]
    hms = hms.reshape(b, n_p, 2 * h2_p).astype(bf16)
    ms = jnp.einsum("bij,bjk->bik", adj, hms, preferred_element_type=f32)
    mean = ms[..., :h2_p]                                 # lane slice on vreg boundary
    logstd = ms[..., h2_p:]

    # --- reparameterization (f32 elementwise; exp goes to the EUP slot) ---
    z = noise_ref[...] * jnp.exp(logstd) + mean

    # --- dot-product decoder: per-graph Z @ Z.T as a last-axis contraction ---
    zb = z.astype(bf16)
    logits = jnp.einsum("bik,bjk->bij", zb, zb, preferred_element_type=f32)
    a_ref[...] = jax.nn.sigmoid(logits)


def vgae_forward(x, adj, w0, wm, ws, noise):
    """Batched forward. x:[B,N,Din], adj:[B,N,N], noise:[B,N,H2]; weights shared.

    Pads every axis up to 128 lanes / sublanes (zero padding is exact for this
    network), runs one gridless pallas_call with everything VMEM-resident, then
    slices the valid [B, N, N] block back out.
    """
    b, n, d_in = x.shape
    h1 = w0.shape[1]
    h2 = wm.shape[1]

    n_p = round_up(n, LANE)
    d_p = round_up(d_in, LANE)
    h1_p = round_up(h1, LANE)
    h2_p = round_up(h2, LANE)

    x_p = jnp.pad(x, ((0, 0), (0, n_p - n), (0, d_p - d_in)))
    adj_p = jnp.pad(adj, ((0, 0), (0, n_p - n), (0, n_p - n)))
    noise_p = jnp.pad(noise, ((0, 0), (0, n_p - n), (0, h2_p - h2)))
    w0_p = jnp.pad(w0, ((0, d_p - d_in), (0, h1_p - h1)))
    wm_p = jnp.pad(wm, ((0, h1_p - h1), (0, h2_p - h2)))
    ws_p = jnp.pad(ws, ((0, h1_p - h1), (0, h2_p - h2)))
    # Fused [Wm | Ws]: the mean/logstd split now falls on a 128-lane boundary.
    wms_p = jnp.concatenate([wm_p, ws_p], axis=1)         # [H1p, 2*H2p]

    vmem_spec = pl.BlockSpec(memory_space=pltpu.MemorySpace.VMEM)
    a_pad = pl.pallas_call(
        vgae_kernel,
        out_shape=jax.ShapeDtypeStruct((b, n_p, n_p), jnp.float32),
        in_specs=[vmem_spec] * 5,
        out_specs=vmem_spec,
    )(x_p, adj_p, w0_p, wms_p, noise_p)

    return a_pad[:, :n, :n]


def vgae_reference(x, adj, w0, wm, ws, noise):
    hidden = jax.nn.relu(adj @ (x @ w0))
    mean = adj @ (hidden @ wm)
    logstd = adj @ (hidden @ ws)
    z = noise * jnp.exp(logstd) + mean
    return jax.nn.sigmoid(z @ jnp.swapaxes(z, -1, -2))


def build_graph(key, n, input_dim, hidden2_dim):
    """Deterministic per-graph inputs: features, normalized adjacency, noise."""
    k_x, k_adj, k_noise = jax.random.split(key, 3)
    x = jax.random.normal(k_x, (n, input_dim), dtype=jnp.float32)
    a_raw = (jax.random.uniform(k_adj, (n, n)) > 0.7).astype(jnp.float32)
    a_sym = jnp.clip(a_raw + a_raw.T, 0.0, 1.0) + jnp.eye(n, dtype=jnp.float32)
    deg = jnp.sum(a_sym, axis=1, keepdims=True)
    adj = a_sym / deg
    noise = jax.random.normal(k_noise, (n, hidden2_dim), dtype=jnp.float32)
    return x, adj, noise


if __name__ == "__main__":
    key = jax.random.PRNGKey(0)
    k_w0, k_wm, k_ws, k_graphs = jax.random.split(key, 4)

    # Glorot-initialized GCN weights (shared across graphs, like the module).
    w0 = glorot_init(k_w0, PARAM["input_dim"], PARAM["hidden1_dim"])
    wm = glorot_init(k_wm, PARAM["hidden1_dim"], PARAM["hidden2_dim"])
    ws = glorot_init(k_ws, PARAM["hidden1_dim"], PARAM["hidden2_dim"])

    # A small batch of deterministic graphs (stand-in for torch.randn noise too).
    graph_keys = jax.random.split(k_graphs, BATCH)
    xs, adjs, noises = [], [], []
    for gk in graph_keys:
        x_i, adj_i, noise_i = build_graph(
            gk, N_NODES, PARAM["input_dim"], PARAM["hidden2_dim"])
        xs.append(x_i)
        adjs.append(adj_i)
        noises.append(noise_i)
    x = jnp.stack(xs)
    adj = jnp.stack(adjs)
    noise = jnp.stack(noises)

    a_pred = jax.jit(vgae_forward)(x, adj, w0, wm, ws, noise)
    a_pred = jax.block_until_ready(a_pred)

    # Pure-f32 reference (exact module semantics). Kernel uses bf16 MXU
    # operands with f32 accumulation, so tolerances are relaxed accordingly.
    a_ref = vgae_reference(x, adj, w0, wm, ws, noise)
    np.testing.assert_allclose(np.asarray(a_pred), np.asarray(a_ref),
                               rtol=5e-2, atol=5e-2)

    print("KERNEL_OK")
</pallas_src>

<mosaic_0001>
module attributes {stable_mosaic.version = 11 : i64} {
  func.func @vgae_kernel(%arg0: memref<2x128x128xf32, #tpu.memory_space<vmem>>, %arg1: memref<2x128x128xf32, #tpu.memory_space<vmem>>, %arg2: memref<128x128xf32, #tpu.memory_space<vmem>>, %arg3: memref<128x256xf32, #tpu.memory_space<vmem>>, %arg4: memref<2x128x128xf32, #tpu.memory_space<vmem>>, %arg5: memref<2x128x128xf32, #tpu.memory_space<vmem>>) attributes {dimension_semantics = [], scalar_prefetch = 0 : i64, scratch_operands = 0 : i64, tpu.core_type = #tpu.core_type<tc>} {
    %c0 = arith.constant 0 : index
    %c0_0 = arith.constant 0 : index
    %c0_1 = arith.constant 0 : index
    %0 = vector.load %arg1[%c0, %c0_0, %c0_1] : memref<2x128x128xf32, #tpu.memory_space<vmem>>, vector<2x128x128xf32>
    %1 = arith.truncf %0 : vector<2x128x128xf32> to vector<2x128x128xbf16>
    %c0_2 = arith.constant 0 : index
    %c0_3 = arith.constant 0 : index
    %c0_4 = arith.constant 0 : index
    %2 = vector.load %arg0[%c0_2, %c0_3, %c0_4] : memref<2x128x128xf32, #tpu.memory_space<vmem>>, vector<2x128x128xf32>
    %3 = vector.shape_cast %2 : vector<2x128x128xf32> to vector<256x128xf32>
    %4 = arith.truncf %3 : vector<256x128xf32> to vector<256x128xbf16>
    %c0_5 = arith.constant 0 : index
    %c0_6 = arith.constant 0 : index
    %5 = vector.load %arg2[%c0_5, %c0_6] : memref<128x128xf32, #tpu.memory_space<vmem>>, vector<128x128xf32>
    %6 = arith.truncf %5 : vector<128x128xf32> to vector<128x128xbf16>
    %cst = arith.constant dense<0.000000e+00> : vector<256x128xf32>
    %7 = tpu.matmul %4, %6, %cst {dimension_numbers = #tpu.dot_dimension_numbers<[1], [0], [0], [1], [0, 0, 1, 1], [], []>} : vector<256x128xbf16>, vector<128x128xbf16>, vector<256x128xf32> -> vector<256x128xf32>
    %8 = vector.shape_cast %7 : vector<256x128xf32> to vector<2x128x128xf32>
    %9 = arith.truncf %8 : vector<2x128x128xf32> to vector<2x128x128xbf16>
    "tpu.trace_start"() <{level = 10 : i32, message = "bij,bjk->bik"}> : () -> ()
    %cst_7 = arith.constant dense<0.000000e+00> : vector<2x128x128xf32>
    %10 = tpu.matmul %1, %9, %cst_7 {dimension_numbers = #tpu.dot_dimension_numbers<[2], [1], [1], [2], [0, 0, 0, 1, 1, 2], [0], [0]>} : vector<2x128x128xbf16>, vector<2x128x128xbf16>, vector<2x128x128xf32> -> vector<2x128x128xf32>
    "tpu.trace_stop"() : () -> ()
    %cst_8 = arith.constant 0.000000e+00 : f32
    %11 = vector.broadcast %cst_8 : f32 to vector<2x128x128xf32>
    %12 = arith.maximumf %10, %11 : vector<2x128x128xf32>
    %13 = vector.shape_cast %12 : vector<2x128x128xf32> to vector<256x128xf32>
    %14 = arith.truncf %13 : vector<256x128xf32> to vector<256x128xbf16>
    %c0_9 = arith.constant 0 : index
    %c0_10 = arith.constant 0 : index
    %15 = vector.load %arg3[%c0_9, %c0_10] : memref<128x256xf32, #tpu.memory_space<vmem>>, vector<128x256xf32>
    %16 = arith.truncf %15 : vector<128x256xf32> to vector<128x256xbf16>
    %cst_11 = arith.constant dense<0.000000e+00> : vector<256x256xf32>
    %17 = tpu.matmul %14, %16, %cst_11 {dimension_numbers = #tpu.dot_dimension_numbers<[1], [0], [0], [1], [0, 0, 1, 1], [], []>} : vector<256x128xbf16>, vector<128x256xbf16>, vector<256x256xf32> -> vector<256x256xf32>
    %18 = vector.shape_cast %17 : vector<256x256xf32> to vector<2x128x256xf32>
    %19 = arith.truncf %18 : vector<2x128x256xf32> to vector<2x128x256xbf16>
    "tpu.trace_start"() <{level = 10 : i32, message = "bij,bjk->bik"}> : () -> ()
    %cst_12 = arith.constant dense<0.000000e+00> : vector<2x128x256xf32>
    %20 = tpu.matmul %1, %19, %cst_12 {dimension_numbers = #tpu.dot_dimension_numbers<[2], [1], [1], [2], [0, 0, 0, 1, 1, 2], [0], [0]>} : vector<2x128x128xbf16>, vector<2x128x256xbf16>, vector<2x128x256xf32> -> vector<2x128x256xf32>
    "tpu.trace_stop"() : () -> ()
    %21 = vector.extract_strided_slice %20 {offsets = [0, 0, 0], sizes = [2, 128, 128], strides = [1, 1, 1]} : vector<2x128x256xf32> to vector<2x128x128xf32>
    %22 = vector.extract_strided_slice %20 {offsets = [0, 0, 128], sizes = [2, 128, 128], strides = [1, 1, 1]} : vector<2x128x256xf32> to vector<2x128x128xf32>
    %c0_13 = arith.constant 0 : index
    %c0_14 = arith.constant 0 : index
    %c0_15 = arith.constant 0 : index
    %23 = vector.load %arg4[%c0_13, %c0_14, %c0_15] : memref<2x128x128xf32, #tpu.memory_space<vmem>>, vector<2x128x128xf32>
    %24 = math.exp %22 : vector<2x128x128xf32>
    %25 = arith.mulf %23, %24 : vector<2x128x128xf32>
    %26 = arith.addf %25, %21 : vector<2x128x128xf32>
    %27 = arith.truncf %26 : vector<2x128x128xf32> to vector<2x128x128xbf16>
    "tpu.trace_start"() <{level = 10 : i32, message = "bik,bjk->bij"}> : () -> ()
    %cst_16 = arith.constant dense<0.000000e+00> : vector<2x128x128xf32>
    %28 = tpu.matmul %27, %27, %cst_16 {dimension_numbers = #tpu.dot_dimension_numbers<[2], [2], [1], [1], [0, 0, 0, 1, 1, 1], [0], [0]>} : vector<2x128x128xbf16>, vector<2x128x128xbf16>, vector<2x128x128xf32> -> vector<2x128x128xf32>
    "tpu.trace_stop"() : () -> ()
    %29 = arith.negf %28 : vector<2x128x128xf32>
    %30 = math.exp %29 : vector<2x128x128xf32>
    %cst_17 = arith.constant 1.000000e+00 : f32
    %31 = vector.broadcast %cst_17 : f32 to vector<2x128x128xf32>
    %32 = arith.addf %31, %30 : vector<2x128x128xf32>
    %33 = arith.divf %31, %32 : vector<2x128x128xf32>
    %c0_18 = arith.constant 0 : index
    %c0_19 = arith.constant 0 : index
    %c0_20 = arith.constant 0 : index
    %34 = vector.load %arg5[%c0_18, %c0_19, %c0_20] : memref<2x128x128xf32, #tpu.memory_space<vmem>>, vector<2x128x128xf32>
    tpu.vector_store %arg5[%c0_18, %c0_19, %c0_20], %33 {strides = array<i32>} : memref<2x128x128xf32, #tpu.memory_space<vmem>>, vector<2x128x128xf32>,
    return
  }
}

</mosaic_0001>

<llo_original>
// kernel: vgae_forward.1
$region0: #{vgae_forward.1}
  #allocation0 [shape = 'u32[]', space=smem, size = 0x4, offset = 0x4, fixed_abs, tag = 'smem constant byte address 0x4 - core index']
  #allocation1 [shape = 'u32[72,128]{1,0:T(1,128)}', space=vmem, size = 0x9000, scoped, tag = 'internal scratch']
  %s0 = inlined_call_operand.vmem [shape: f32[2,128,128], index: 0, kind: input, shape index: {}]
  %s1 = inlined_call_operand.vmem [shape: f32[2,128,128], index: 1, kind: input, shape index: {}]
  %s2 = inlined_call_operand.vmem [shape: f32[128,128], index: 2, kind: input, shape index: {}]
  %s3 = inlined_call_operand.vmem [shape: f32[128,256], index: 3, kind: input, shape index: {}]
  %s4 = inlined_call_operand.vmem [shape: f32[2,128,128], index: 4, kind: input, shape index: {}]
  %s5 = inlined_call_operand.vmem [shape: f32[2,128,128], index: 5, kind: output, shape index: {}]
  %s6 = sld [smem:[#allocation0]]
  $region30: #{vgae_forward.1} parent=0
    _
  %s8 = ssub.s32 1, %s6
  %s9 = scalar_select 0, %s8, %s6
  // Predicated region
  $region2: #{vgae_forward.1} parent=0 // pred_check
    _
  $region3: #{vgae_forward.1} parent=0 // pred_check_branch
    %11 = sbr.rel (0) target = $region5
  $region4: #{vgae_forward.1} parent=0 // pred_region
    _
  $region5: #{vgae_forward.1} parent=0 // pred_fallthru
    _
  // Predicated region
  $region6: #{vgae_forward.1} parent=0 // pred_check
    _
  $region7: #{vgae_forward.1} parent=0 // pred_check_branch
    %13 = sbr.rel (0) target = $region9
  $region8: #{vgae_forward.1} parent=0 // pred_region
    _
  $region9: #{vgae_forward.1} parent=0 // pred_fallthru
    _
  // Predicated region
  $region10: #{vgae_forward.1} parent=0 // pred_check
    _
  $region11: #{vgae_forward.1} parent=0 // pred_check_branch
    %15 = sbr.rel (0) target = $region13
  $region12: #{vgae_forward.1} parent=0 // pred_region
    _
  $region13: #{vgae_forward.1} parent=0 // pred_fallthru
    _
  // Predicated region
  $region14: #{vgae_forward.1} parent=0 // pred_check
    _
  $region15: #{vgae_forward.1} parent=0 // pred_check_branch
    %17 = sbr.rel (0) target = $region17
  $region16: #{vgae_forward.1} parent=0 // pred_region
    _
  $region17: #{vgae_forward.1} parent=0 // pred_fallthru
    _
  // Predicated region
  $region18: #{vgae_forward.1} parent=0 // pred_check
    _
  $region19: #{vgae_forward.1} parent=0 // pred_check_branch
    %19 = sbr.rel (0) target = $region21
  $region20: #{vgae_forward.1} parent=0 // pred_region
    _
  $region21: #{vgae_forward.1} parent=0 // pred_fallthru
    _
  %v20 = vld [vmem:[%s1] sm:$0xff]
  %v21 = vld [vmem:[%s1 + $0x8] sm:$0xff]
  %v22 = vld [vmem:[%s1 + $0x10] sm:$0xff]
  %v23 = vld [vmem:[%s1 + $0x18] sm:$0xff]
  %v24 = vld [vmem:[%s1 + $0x20] sm:$0xff]
  %v25 = vld [vmem:[%s1 + $0x28] sm:$0xff]
  %v26 = vld [vmem:[%s1 + $0x30] sm:$0xff]
  %v27 = vld [vmem:[%s1 + $0x38] sm:$0xff]
  %v28 = vld [vmem:[%s1 + $0x40] sm:$0xff]
  %v29 = vld [vmem:[%s1 + $0x48] sm:$0xff]
  %v30 = vld [vmem:[%s1 + $0x50] sm:$0xff]
  %v31 = vld [vmem:[%s1 + $0x58] sm:$0xff]
  %v32 = vld [vmem:[%s1 + $0x60] sm:$0xff]
  %v33 = vld [vmem:[%s1 + $0x68] sm:$0xff]
  %v34 = vld [vmem:[%s1 + $0x70] sm:$0xff]
  %v35 = vld [vmem:[%s1 + $0x78] sm:$0xff]
  %v36 = vld [vmem:[%s1 + $0x80] sm:$0xff]
  %v37 = vld [vmem:[%s1 + $0x88] sm:$0xff]
  %v38 = vld [vmem:[%s1 + $0x90] sm:$0xff]
  %v39 = vld [vmem:[%s1 + $0x98] sm:$0xff]
  %v40 = vld [vmem:[%s1 + $0xa0] sm:$0xff]
  %v41 = vld [vmem:[%s1 + $0xa8] sm:$0xff]
  %v42 = vld [vmem:[%s1 + $0xb0] sm:$0xff]
  %v43 = vld [vmem:[%s1 + $0xb8] sm:$0xff]
  %v44 = vld [vmem:[%s1 + $0xc0] sm:$0xff]
  %v45 = vld [vmem:[%s1 + $0xc8] sm:$0xff]
  %v46 = vld [vmem:[%s1 + $0xd0] sm:$0xff]
  %v47 = vld [vmem:[%s1 + $0xd8] sm:$0xff]
  %v48 = vld [vmem:[%s1 + $0xe0] sm:$0xff]
  %v49 = vld [vmem:[%s1 + $0xe8] sm:$0xff]
  %v50 = vld [vmem:[%s1 + $0xf0] sm:$0xff]
  %v51 = vld [vmem:[%s1 + $0xf8] sm:$0xff]
  %v52 = vpack.c.bf16 %v20, %v20
  %v53 = vpack.c.bf16 %v21, %v21
  %v54 = vpack.c.bf16 %v22, %v22
  %v55 = vpack.c.bf16 %v23, %v23
  %v56 = vpack.c.bf16 %v24, %v24
  %v57 = vpack.c.bf16 %v25, %v25
  %v58 = vpack.c.bf16 %v26, %v26
  %v59 = vpack.c.bf16 %v27, %v27
  %v60 = vpack.c.bf16 %v28, %v28
  %v61 = vpack.c.bf16 %v29, %v29
  %v62 = vpack.c.bf16 %v30, %v30
  %v63 = vpack.c.bf16 %v31, %v31
  %v64 = vpack.c.bf16 %v32, %v32
  %v65 = vpack.c.bf16 %v33, %v33
  %v66 = vpack.c.bf16 %v34, %v34
  %v67 = vpack.c.bf16 %v35, %v35
  %v68 = vpack.c.bf16 %v36, %v36
  %v69 = vpack.c.bf16 %v37, %v37
  %v70 = vpack.c.bf16 %v38, %v38
  %v71 = vpack.c.bf16 %v39, %v39
  %v72 = vpack.c.bf16 %v40, %v40
  %v73 = vpack.c.bf16 %v41, %v41
  %v74 = vpack.c.bf16 %v42, %v42
  %v75 = vpack.c.bf16 %v43, %v43
  %v76 = vpack.c.bf16 %v44, %v44
  %v77 = vpack.c.bf16 %v45, %v45
  %v78 = vpack.c.bf16 %v46, %v46
  %v79 = vpack.c.bf16 %v47, %v47
  %v80 = vpack.c.bf16 %v48, %v48
  %v81 = vpack.c.bf16 %v49, %v49
  %v82 = vpack.c.bf16 %v50, %v50
  %v83 = vpack.c.bf16 %v51, %v51
  %v84 = vld [vmem:[%s0] sm:$0xff]
  %v85 = vld [vmem:[%s0 + $0x8] sm:$0xff]
  %v86 = vld [vmem:[%s0 + $0x10] sm:$0xff]
  %v87 = vld [vmem:[%s0 + $0x18] sm:$0xff]
  %v88 = vld [vmem:[%s0 + $0x20] sm:$0xff]
  %v89 = vld [vmem:[%s0 + $0x28] sm:$0xff]
  %v90 = vld [vmem:[%s0 + $0x30] sm:$0xff]
  %v91 = vld [vmem:[%s0 + $0x38] sm:$0xff]
  %v92 = vld [vmem:[%s0 + $0x40] sm:$0xff]
  %v93 = vld [vmem:[%s0 + $0x48] sm:$0xff]
  %v94 = vld [vmem:[%s0 + $0x50] sm:$0xff]
  %v95 = vld [vmem:[%s0 + $0x58] sm:$0xff]
  %v96 = vld [vmem:[%s0 + $0x60] sm:$0xff]
  %v97 = vld [vmem:[%s0 + $0x68] sm:$0xff]
  %v98 = vld [vmem:[%s0 + $0x70] sm:$0xff]
  %v99 = vld [vmem:[%s0 + $0x78] sm:$0xff]
  %v100 = vld [vmem:[%s0 + $0x80] sm:$0xff]
  %v101 = vld [vmem:[%s0 + $0x88] sm:$0xff]
  %v102 = vld [vmem:[%s0 + $0x90] sm:$0xff]
  %v103 = vld [vmem:[%s0 + $0x98] sm:$0xff]
  %v104 = vld [vmem:[%s0 + $0xa0] sm:$0xff]
  %v105 = vld [vmem:[%s0 + $0xa8] sm:$0xff]
  %v106 = vld [vmem:[%s0 + $0xb0] sm:$0xff]
  %v107 = vld [vmem:[%s0 + $0xb8] sm:$0xff]
  %v108 = vld [vmem:[%s0 + $0xc0] sm:$0xff]
  %v109 = vld [vmem:[%s0 + $0xc8] sm:$0xff]
  %v110 = vld [vmem:[%s0 + $0xd0] sm:$0xff]
  %v111 = vld [vmem:[%s0 + $0xd8] sm:$0xff]
  %v112 = vld [vmem:[%s0 + $0xe0] sm:$0xff]
  %v113 = vld [vmem:[%s0 + $0xe8] sm:$0xff]
  %v114 = vld [vmem:[%s0 + $0xf0] sm:$0xff]
  %v115 = vld [vmem:[%s0 + $0xf8] sm:$0xff]
  %v116 = vpack.c.bf16 %v85, %v84
  %v117 = vpack.c.bf16 %v87, %v86
  %v118 = vpack.c.bf16 %v89, %v88
  %v119 = vpack.c.bf16 %v91, %v90
  %v120 = vpack.c.bf16 %v93, %v92
  %v121 = vpack.c.bf16 %v95, %v94
  %v122 = vpack.c.bf16 %v97, %v96
  %v123 = vpack.c.bf16 %v99, %v98
  %v124 = vpack.c.bf16 %v101, %v100
  %v125 = vpack.c.bf16 %v103, %v102
  %v126 = vpack.c.bf16 %v105, %v104
  %v127 = vpack.c.bf16 %v107, %v106
  %v128 = vpack.c.bf16 %v109, %v108
  %v129 = vpack.c.bf16 %v111, %v110
  %v130 = vpack.c.bf16 %v113, %v112
  %v131 = vpack.c.bf16 %v115, %v114
  %v132 = vld [vmem:[%s2] sm:$0xff]
  %v133 = vld [vmem:[%s2 + $0x8] sm:$0xff]
  %v134 = vld [vmem:[%s2 + $0x10] sm:$0xff]
  %v135 = vld [vmem:[%s2 + $0x18] sm:$0xff]
  %v136 = vld [vmem:[%s2 + $0x20] sm:$0xff]
  %v137 = vld [vmem:[%s2 + $0x28] sm:$0xff]
  %v138 = vld [vmem:[%s2 + $0x30] sm:$0xff]
  %v139 = vld [vmem:[%s2 + $0x38] sm:$0xff]
  %v140 = vld [vmem:[%s2 + $0x40] sm:$0xff]
  %v141 = vld [vmem:[%s2 + $0x48] sm:$0xff]
  %v142 = vld [vmem:[%s2 + $0x50] sm:$0xff]
  %v143 = vld [vmem:[%s2 + $0x58] sm:$0xff]
  %v144 = vld [vmem:[%s2 + $0x60] sm:$0xff]
  %v145 = vld [vmem:[%s2 + $0x68] sm:$0xff]
  %v146 = vld [vmem:[%s2 + $0x70] sm:$0xff]
  %v147 = vld [vmem:[%s2 + $0x78] sm:$0xff]
  %v148 = vpack.c.bf16 %v133, %v132
  %v149 = vpack.c.bf16 %v135, %v134
  %v150 = vpack.c.bf16 %v137, %v136
  %v151 = vpack.c.bf16 %v139, %v138
  %v152 = vpack.c.bf16 %v141, %v140
  %v153 = vpack.c.bf16 %v143, %v142
  %v154 = vpack.c.bf16 %v145, %v144
  %v155 = vpack.c.bf16 %v147, %v146
  %156 = vmatpush.bf16.msra.mxu0 %v155
  %157 = vmatpush.bf16.msra.mxu0 %v154
  %158 = vmatpush.bf16.msra.mxu0 %v153
  %159 = vmatpush.bf16.msra.mxu0 %v152
  %160 = vmatpush.bf16.msra.mxu0 %v151
  %161 = vmatpush.bf16.msra.mxu0 %v150
  %162 = vmatpush.bf16.msra.mxu0 %v149
  %163 = vmatpush.bf16.msra.mxu0 %v148
  %164 = vmatmul.bf16.gmra.mxu0 %v116
  %v165 = vpop.f32.mrf.mxu0
  %v166 = vadd.f32 0.0, %v165
  %v167 = vpop.f32.mrf.mxu0
  %v168 = vadd.f32 0.0, %v167
  %169 = vmatmul.bf16.gmra.mxu0 %v117
  %v170 = vpop.f32.mrf.mxu0
  %v171 = vadd.f32 0.0, %v170
  %v172 = vpop.f32.mrf.mxu0
  %v173 = vadd.f32 0.0, %v172
  %174 = vmatmul.bf16.gmra.mxu0 %v118
  %v175 = vpop.f32.mrf.mxu0
  %v176 = vadd.f32 0.0, %v175
  %v177 = vpop.f32.mrf.mxu0
  %v178 = vadd.f32 0.0, %v177
  %179 = vmatmul.bf16.gmra.mxu0 %v119
  %v180 = vpop.f32.mrf.mxu0
  %v181 = vadd.f32 0.0, %v180
  %v182 = vpop.f32.mrf.mxu0
  %v183 = vadd.f32 0.0, %v182
  %184 = vmatmul.bf16.gmra.mxu0 %v120
  %v185 = vpop.f32.mrf.mxu0
  %v186 = vadd.f32 0.0, %v185
  %v187 = vpop.f32.mrf.mxu0
  %v188 = vadd.f32 0.0, %v187
  %189 = vmatmul.bf16.gmra.mxu0 %v121
  %v190 = vpop.f32.mrf.mxu0
  %v191 = vadd.f32 0.0, %v190
  %v192 = vpop.f32.mrf.mxu0
  %v193 = vadd.f32 0.0, %v192
  %194 = vmatmul.bf16.gmra.mxu0 %v122
  %v195 = vpop.f32.mrf.mxu0
  %v196 = vadd.f32 0.0, %v195
  %v197 = vpop.f32.mrf.mxu0
  %v198 = vadd.f32 0.0, %v197
  %199 = vmatmul.bf16.gmra.mxu0 %v123
  %v200 = vpop.f32.mrf.mxu0
  %v201 = vadd.f32 0.0, %v200
  %v202 = vpop.f32.mrf.mxu0
  %v203 = vadd.f32 0.0, %v202
  %204 = vmatmul.bf16.gmra.mxu0 %v124
  %v205 = vpop.f32.mrf.mxu0
  %v206 = vadd.f32 0.0, %v205
  %v207 = vpop.f32.mrf.mxu0
  %v208 = vadd.f32 0.0, %v207
  %209 = vmatmul.bf16.gmra.mxu0 %v125
  %v210 = vpop.f32.mrf.mxu0
  %v211 = vadd.f32 0.0, %v210
  %v212 = vpop.f32.mrf.mxu0
  %v213 = vadd.f32 0.0, %v212
  %214 = vmatmul.bf16.gmra.mxu0 %v126
  %v215 = vpop.f32.mrf.mxu0
  %v216 = vadd.f32 0.0, %v215
  %v217 = vpop.f32.mrf.mxu0
  %v218 = vadd.f32 0.0, %v217
  %219 = vmatmul.bf16.gmra.mxu0 %v127
  %v220 = vpop.f32.mrf.mxu0
  %v221 = vadd.f32 0.0, %v220
  %v222 = vpop.f32.mrf.mxu0
  %v223 = vadd.f32 0.0, %v222
  %224 = vmatmul.bf16.gmra.mxu0 %v128
  %v225 = vpop.f32.mrf.mxu0
  %v226 = vadd.f32 0.0, %v225
  %v227 = vpop.f32.mrf.mxu0
  %v228 = vadd.f32 0.0, %v227
  %229 = vmatmul.bf16.gmra.mxu0 %v129
  %v230 = vpop.f32.mrf.mxu0
  %v231 = vadd.f32 0.0, %v230
  %v232 = vpop.f32.mrf.mxu0
  %v233 = vadd.f32 0.0, %v232
  %234 = vmatmul.bf16.gmra.mxu0 %v130
  %v235 = vpop.f32.mrf.mxu0
  %v236 = vadd.f32 0.0, %v235
  %v237 = vpop.f32.mrf.mxu0
  %v238 = vadd.f32 0.0, %v237
  %239 = vmatmul.bf16.gmra.mxu0 %v131
  %v240 = vpop.f32.mrf.mxu0
  %v241 = vadd.f32 0.0, %v240
  %v242 = vpop.f32.mrf.mxu0
  %v243 = vadd.f32 0.0, %v242
  %244 = vdwg.mxu0
  %v245 = vpack.c.bf16 %v166, %v166
  %v246 = vpack.c.bf16 %v168, %v168
  %v247 = vpack.c.bf16 %v171, %v171
  %v248 = vpack.c.bf16 %v173, %v173
  %v249 = vpack.c.bf16 %v176, %v176
  %v250 = vpack.c.bf16 %v178, %v178
  %v251 = vpack.c.bf16 %v181, %v181
  %v252 = vpack.c.bf16 %v183, %v183
  %v253 = vpack.c.bf16 %v186, %v186
  %v254 = vpack.c.bf16 %v188, %v188
  %v255 = vpack.c.bf16 %v191, %v191
  %v256 = vpack.c.bf16 %v193, %v193
  %v257 = vpack.c.bf16 %v196, %v196
  %v258 = vpack.c.bf16 %v198, %v198
  %v259 = vpack.c.bf16 %v201, %v201
  %v260 = vpack.c.bf16 %v203, %v203
  %v261 = vpack.c.bf16 %v206, %v206
  %v262 = vpack.c.bf16 %v208, %v208
  %v263 = vpack.c.bf16 %v211, %v211
  %v264 = vpack.c.bf16 %v213, %v213
  %v265 = vpack.c.bf16 %v216, %v216
  %v266 = vpack.c.bf16 %v218, %v218
  %v267 = vpack.c.bf16 %v221, %v221
  %v268 = vpack.c.bf16 %v223, %v223
  %v269 = vpack.c.bf16 %v226, %v226
  %v270 = vpack.c.bf16 %v228, %v228
  %v271 = vpack.c.bf16 %v231, %v231
  %v272 = vpack.c.bf16 %v233, %v233
  %v273 = vpack.c.bf16 %v236, %v236
  %v274 = vpack.c.bf16 %v238, %v238
  %v275 = vpack.c.bf16 %v241, %v241
  %v276 = vpack.c.bf16 %v243, %v243
  %v293 = vunpack.c.l.b16 %v52
  %v294 = vunpack.c.l.b16 %v53
  %v295 = vunpack.c.l.b16 %v54
  %v296 = vunpack.c.l.b16 %v55
  %v297 = vunpack.c.l.b16 %v56
  %v298 = vunpack.c.l.b16 %v57
  %v299 = vunpack.c.l.b16 %v58
  %v300 = vunpack.c.l.b16 %v59
  %v301 = vunpack.c.l.b16 %v60
  %v302 = vunpack.c.l.b16 %v61
  %v303 = vunpack.c.l.b16 %v62
  %v304 = vunpack.c.l.b16 %v63
  %v305 = vunpack.c.l.b16 %v64
  %v306 = vunpack.c.l.b16 %v65
  %v307 = vunpack.c.l.b16 %v66
  %v308 = vunpack.c.l.b16 %v67
  %v309 = vpack.c.b16 %v294, %v293
  %v310 = vpack.c.b16 %v296, %v295
  %v311 = vpack.c.b16 %v298, %v297
  %v312 = vpack.c.b16 %v300, %v299
  %v313 = vpack.c.b16 %v302, %v301
  %v314 = vpack.c.b16 %v304, %v303
  %v315 = vpack.c.b16 %v306, %v305
  %v316 = vpack.c.b16 %v308, %v307
  %v341 = vunpack.c.l.b16 %v245
  %v342 = vunpack.c.l.b16 %v246
  %v343 = vunpack.c.l.b16 %v247
  %v344 = vunpack.c.l.b16 %v248
  %v345 = vunpack.c.l.b16 %v249
  %v346 = vunpack.c.l.b16 %v250
  %v347 = vunpack.c.l.b16 %v251
  %v348 = vunpack.c.l.b16 %v252
  %v349 = vunpack.c.l.b16 %v253
  %v350 = vunpack.c.l.b16 %v254
  %v351 = vunpack.c.l.b16 %v255
  %v352 = vunpack.c.l.b16 %v256
  %v353 = vunpack.c.l.b16 %v257
  %v354 = vunpack.c.l.b16 %v258
  %v355 = vunpack.c.l.b16 %v259
  %v356 = vunpack.c.l.b16 %v260
  %v357 = vpack.c.b16 %v342, %v341
  %v358 = vpack.c.b16 %v344, %v343
  %v359 = vpack.c.b16 %v346, %v345
  %v360 = vpack.c.b16 %v348, %v347
  %v361 = vpack.c.b16 %v350, %v349
  %v362 = vpack.c.b16 %v352, %v351
  %v363 = vpack.c.b16 %v354, %v353
  %v364 = vpack.c.b16 %v356, %v355
  %373 = vmatpush.bf16.msra.mxu0 %v364
  %374 = vmatpush.bf16.msra.mxu0 %v363
  %375 = vmatpush.bf16.msra.mxu0 %v362
  %376 = vmatpush.bf16.msra.mxu0 %v361
  %377 = vmatpush.bf16.msra.mxu0 %v360
  %378 = vmatpush.bf16.msra.mxu0 %v359
  %379 = vmatpush.bf16.msra.mxu0 %v358
  %380 = vmatpush.bf16.msra.mxu0 %v357
  %381 = vmatmul.bf16.gmra.mxu0 %v309
  %v382 = vpop.f32.mrf.mxu0
  %v383 = vadd.f32 0.0, %v382
  %v384 = vpop.f32.mrf.mxu0
  %v385 = vadd.f32 0.0, %v384
  %386 = vmatmul.bf16.gmra.mxu0 %v310
  %v387 = vpop.f32.mrf.mxu0
  %v388 = vadd.f32 0.0, %v387
  %v389 = vpop.f32.mrf.mxu0
  %v390 = vadd.f32 0.0, %v389
  %391 = vmatmul.bf16.gmra.mxu0 %v311
  %v392 = vpop.f32.mrf.mxu0
  %v393 = vadd.f32 0.0, %v392
  %v394 = vpop.f32.mrf.mxu0
  %v395 = vadd.f32 0.0, %v394
  %396 = vmatmul.bf16.gmra.mxu0 %v312
  %v397 = vpop.f32.mrf.mxu0
  %v398 = vadd.f32 0.0, %v397
  %v399 = vpop.f32.mrf.mxu0
  %v400 = vadd.f32 0.0, %v399
  %401 = vmatmul.bf16.gmra.mxu0 %v313
  %v402 = vpop.f32.mrf.mxu0
  %v403 = vadd.f32 0.0, %v402
  %v404 = vpop.f32.mrf.mxu0
  %v405 = vadd.f32 0.0, %v404
  %406 = vmatmul.bf16.gmra.mxu0 %v314
  %v407 = vpop.f32.mrf.mxu0
  %v408 = vadd.f32 0.0, %v407
  %v409 = vpop.f32.mrf.mxu0
  %v410 = vadd.f32 0.0, %v409
  %411 = vmatmul.bf16.gmra.mxu0 %v315
  %v412 = vpop.f32.mrf.mxu0
  %v413 = vadd.f32 0.0, %v412
  %v414 = vpop.f32.mrf.mxu0
  %v415 = vadd.f32 0.0, %v414
  %416 = vmatmul.bf16.gmra.mxu0 %v316
  %v417 = vpop.f32.mrf.mxu0
  %v418 = vadd.f32 0.0, %v417
  %v419 = vpop.f32.mrf.mxu0
  %v420 = vadd.f32 0.0, %v419
  %421 = vdwg.mxu0
  %v438 = vunpack.c.l.b16 %v68
  %v439 = vunpack.c.l.b16 %v69
  %v440 = vunpack.c.l.b16 %v70
  %v441 = vunpack.c.l.b16 %v71
  %v442 = vunpack.c.l.b16 %v72
  %v443 = vunpack.c.l.b16 %v73
  %v444 = vunpack.c.l.b16 %v74
  %v445 = vunpack.c.l.b16 %v75
  %v446 = vunpack.c.l.b16 %v76
  %v447 = vunpack.c.l.b16 %v77
  %v448 = vunpack.c.l.b16 %v78
  %v449 = vunpack.c.l.b16 %v79
  %v450 = vunpack.c.l.b16 %v80
  %v451 = vunpack.c.l.b16 %v81
  %v452 = vunpack.c.l.b16 %v82
  %v453 = vunpack.c.l.b16 %v83
  %v454 = vpack.c.b16 %v439, %v438
  %v455 = vpack.c.b16 %v441, %v440
  %v456 = vpack.c.b16 %v443, %v442
  %v457 = vpack.c.b16 %v445, %v444
  %v458 = vpack.c.b16 %v447, %v446
  %v459 = vpack.c.b16 %v449, %v448
  %v460 = vpack.c.b16 %v451, %v450
  %v461 = vpack.c.b16 %v453, %v452
  %v486 = vunpack.c.l.b16 %v261
  %v487 = vunpack.c.l.b16 %v262
  %v488 = vunpack.c.l.b16 %v263
  %v489 = vunpack.c.l.b16 %v264
  %v490 = vunpack.c.l.b16 %v265
  %v491 = vunpack.c.l.b16 %v266
  %v492 = vunpack.c.l.b16 %v267
  %v493 = vunpack.c.l.b16 %v268
  %v494 = vunpack.c.l.b16 %v269
  %v495 = vunpack.c.l.b16 %v270
  %v496 = vunpack.c.l.b16 %v271
  %v497 = vunpack.c.l.b16 %v272
  %v498 = vunpack.c.l.b16 %v273
  %v499 = vunpack.c.l.b16 %v274
  %v500 = vunpack.c.l.b16 %v275
  %v501 = vunpack.c.l.b16 %v276
  %v502 = vpack.c.b16 %v487, %v486
  %v503 = vpack.c.b16 %v489, %v488
  %v504 = vpack.c.b16 %v491, %v490
  %v505 = vpack.c.b16 %v493, %v492
  %v506 = vpack.c.b16 %v495, %v494
  %v507 = vpack.c.b16 %v497, %v496
  %v508 = vpack.c.b16 %v499, %v498
  %v509 = vpack.c.b16 %v501, %v500
  %518 = vmatpush.bf16.msra.mxu0 %v509
  %519 = vmatpush.bf16.msra.mxu0 %v508
  %520 = vmatpush.bf16.msra.mxu0 %v507
  %521 = vmatpush.bf16.msra.mxu0 %v506
  %522 = vmatpush.bf16.msra.mxu0 %v505
  %523 = vmatpush.bf16.msra.mxu0 %v504
  %524 = vmatpush.bf16.msra.mxu0 %v503
  %525 = vmatpush.bf16.msra.mxu0 %v502
  %526 = vmatmul.bf16.gmra.mxu0 %v454
  %v527 = vpop.f32.mrf.mxu0
  %v528 = vadd.f32 0.0, %v527
  %v529 = vpop.f32.mrf.mxu0
  %v530 = vadd.f32 0.0, %v529
  %531 = vmatmul.bf16.gmra.mxu0 %v455
  %v532 = vpop.f32.mrf.mxu0
  %v533 = vadd.f32 0.0, %v532
  %v534 = vpop.f32.mrf.mxu0
  %v535 = vadd.f32 0.0, %v534
  %536 = vmatmul.bf16.gmra.mxu0 %v456
  %v537 = vpop.f32.mrf.mxu0
  %v538 = vadd.f32 0.0, %v537
  %v539 = vpop.f32.mrf.mxu0
  %v540 = vadd.f32 0.0, %v539
  %541 = vmatmul.bf16.gmra.mxu0 %v457
  %v542 = vpop.f32.mrf.mxu0
  %v543 = vadd.f32 0.0, %v542
  %v544 = vpop.f32.mrf.mxu0
  %v545 = vadd.f32 0.0, %v544
  %546 = vmatmul.bf16.gmra.mxu0 %v458
  %v547 = vpop.f32.mrf.mxu0
  %v548 = vadd.f32 0.0, %v547
  %v549 = vpop.f32.mrf.mxu0
  %v550 = vadd.f32 0.0, %v549
  %551 = vmatmul.bf16.gmra.mxu0 %v459
  %v552 = vpop.f32.mrf.mxu0
  %v553 = vadd.f32 0.0, %v552
  %v554 = vpop.f32.mrf.mxu0
  %v555 = vadd.f32 0.0, %v554
  %556 = vmatmul.bf16.gmra.mxu0 %v460
  %v557 = vpop.f32.mrf.mxu0
  %v558 = vadd.f32 0.0, %v557
  %v559 = vpop.f32.mrf.mxu0
  %v560 = vadd.f32 0.0, %v559
  %561 = vmatmul.bf16.gmra.mxu0 %v461
  %v562 = vpop.f32.mrf.mxu0
  %v563 = vadd.f32 0.0, %v562
  %v564 = vpop.f32.mrf.mxu0
  %v565 = vadd.f32 0.0, %v564
  %566 = vdwg.mxu0
  %v567 = vmax.f32 %v383, 0.0
  %v568 = vmax.f32 %v385, 0.0
  %v569 = vmax.f32 %v388, 0.0
  %v570 = vmax.f32 %v390, 0.0
  %v571 = vmax.f32 %v393, 0.0
  %v572 = vmax.f32 %v395, 0.0
  %v573 = vmax.f32 %v398, 0.0
  %v574 = vmax.f32 %v400, 0.0
  %v575 = vmax.f32 %v403, 0.0
  %v576 = vmax.f32 %v405, 0.0
  %v577 = vmax.f32 %v408, 0.0
  %v578 = vmax.f32 %v410, 0.0
  %v579 = vmax.f32 %v413, 0.0
  %v580 = vmax.f32 %v415, 0.0
  %v581 = vmax.f32 %v418, 0.0
  %v582 = vmax.f32 %v420, 0.0
  %v583 = vmax.f32 %v528, 0.0
  %v584 = vmax.f32 %v530, 0.0
  %v585 = vmax.f32 %v533, 0.0
  %v586 = vmax.f32 %v535, 0.0
  %v587 = vmax.f32 %v538, 0.0
  %v588 = vmax.f32 %v540, 0.0
  %v589 = vmax.f32 %v543, 0.0
  %v590 = vmax.f32 %v545, 0.0
  %v591 = vmax.f32 %v548, 0.0
  %v592 = vmax.f32 %v550, 0.0
  %v593 = vmax.f32 %v553, 0.0
  %v594 = vmax.f32 %v555, 0.0
  %v595 = vmax.f32 %v558, 0.0
  %v596 = vmax.f32 %v560, 0.0
  %v597 = vmax.f32 %v563, 0.0
  %v598 = vmax.f32 %v565, 0.0
  %v599 = vpack.c.bf16 %v568, %v567
  %v600 = vpack.c.bf16 %v570, %v569
  %v601 = vpack.c.bf16 %v572, %v571
  %v602 = vpack.c.bf16 %v574, %v573
  %v603 = vpack.c.bf16 %v576, %v575
  %v604 = vpack.c.bf16 %v578, %v577
  %v605 = vpack.c.bf16 %v580, %v579
  %v606 = vpack.c.bf16 %v582, %v581
  %v607 = vpack.c.bf16 %v584, %v583
  %v608 = vpack.c.bf16 %v586, %v585
  %v609 = vpack.c.bf16 %v588, %v587
  %v610 = vpack.c.bf16 %v590, %v589
  %v611 = vpack.c.bf16 %v592, %v591
  %v612 = vpack.c.bf16 %v594, %v593
  %v613 = vpack.c.bf16 %v596, %v595
  %v614 = vpack.c.bf16 %v598, %v597
  %v615 = vld [vmem:[%s3] sm:$0xff]
  %v616 = vld [vmem:[%s3 + $0x8] sm:$0xff]
  %v617 = vld [vmem:[%s3 + $0x10] sm:$0xff]
  %v618 = vld [vmem:[%s3 + $0x18] sm:$0xff]
  %v619 = vld [vmem:[%s3 + $0x20] sm:$0xff]
  %v620 = vld [vmem:[%s3 + $0x28] sm:$0xff]
  %v621 = vld [vmem:[%s3 + $0x30] sm:$0xff]
  %v622 = vld [vmem:[%s3 + $0x38] sm:$0xff]
  %v623 = vld [vmem:[%s3 + $0x40] sm:$0xff]
  %v624 = vld [vmem:[%s3 + $0x48] sm:$0xff]
  %v625 = vld [vmem:[%s3 + $0x50] sm:$0xff]
  %v626 = vld [vmem:[%s3 + $0x58] sm:$0xff]
  %v627 = vld [vmem:[%s3 + $0x60] sm:$0xff]
  %v628 = vld [vmem:[%s3 + $0x68] sm:$0xff]
  %v629 = vld [vmem:[%s3 + $0x70] sm:$0xff]
  %v630 = vld [vmem:[%s3 + $0x78] sm:$0xff]
  %v631 = vld [vmem:[%s3 + $0x80] sm:$0xff]
  %v632 = vld [vmem:[%s3 + $0x88] sm:$0xff]
  %v633 = vld [vmem:[%s3 + $0x90] sm:$0xff]
  %v634 = vld [vmem:[%s3 + $0x98] sm:$0xff]
  %v635 = vld [vmem:[%s3 + $0xa0] sm:$0xff]
  %v636 = vld [vmem:[%s3 + $0xa8] sm:$0xff]
  %v637 = vld [vmem:[%s3 + $0xb0] sm:$0xff]
  %v638 = vld [vmem:[%s3 + $0xb8] sm:$0xff]
  %v639 = vld [vmem:[%s3 + $0xc0] sm:$0xff]
  %v640 = vld [vmem:[%s3 + $0xc8] sm:$0xff]
  %v641 = vld [vmem:[%s3 + $0xd0] sm:$0xff]
  %v642 = vld [vmem:[%s3 + $0xd8] sm:$0xff]
  %v643 = vld [vmem:[%s3 + $0xe0] sm:$0xff]
  %v644 = vld [vmem:[%s3 + $0xe8] sm:$0xff]
  %v645 = vld [vmem:[%s3 + $0xf0] sm:$0xff]
  %v646 = vld [vmem:[%s3 + $0xf8] sm:$0xff]
  %v647 = vpack.c.bf16 %v617, %v615
  %v648 = vpack.c.bf16 %v618, %v616
  %v649 = vpack.c.bf16 %v621, %v619
  %v650 = vpack.c.bf16 %v622, %v620
  %v651 = vpack.c.bf16 %v625, %v623
  %v652 = vpack.c.bf16 %v626, %v624
  %v653 = vpack.c.bf16 %v629, %v627
  %v654 = vpack.c.bf16 %v630, %v628
  %v655 = vpack.c.bf16 %v633, %v631
  %v656 = vpack.c.bf16 %v634, %v632
  %v657 = vpack.c.bf16 %v637, %v635
  %v658 = vpack.c.bf16 %v638, %v636
  %v659 = vpack.c.bf16 %v641, %v639
  %v660 = vpack.c.bf16 %v642, %v640
  %v661 = vpack.c.bf16 %v645, %v643
  %v662 = vpack.c.bf16 %v646, %v644
  %663 = vmatpush.bf16.msra.mxu0 %v661
  %664 = vmatpush.bf16.msra.mxu0 %v659
  %665 = vmatpush.bf16.msra.mxu0 %v657
  %666 = vmatpush.bf16.msra.mxu0 %v655
  %667 = vmatpush.bf16.msra.mxu0 %v653
  %668 = vmatpush.bf16.msra.mxu0 %v651
  %669 = vmatpush.bf16.msra.mxu0 %v649
  %670 = vmatpush.bf16.msra.mxu0 %v647
  %671 = vmatmul.bf16.gmra.mxu0 %v599
  %v672 = vpop.f32.mrf.mxu0
  %v673 = vadd.f32 0.0, %v672
  %v674 = vpop.f32.mrf.mxu0
  %v675 = vadd.f32 0.0, %v674
  %676 = vmatmul.bf16.gmra.mxu0 %v600
  %v677 = vpop.f32.mrf.mxu0
  %v678 = vadd.f32 0.0, %v677
  %v679 = vpop.f32.mrf.mxu0
  %v680 = vadd.f32 0.0, %v679
  %681 = vmatmul.bf16.gmra.mxu0 %v601
  %v682 = vpop.f32.mrf.mxu0
  %v683 = vadd.f32 0.0, %v682
  %v684 = vpop.f32.mrf.mxu0
  %v685 = vadd.f32 0.0, %v684
  %686 = vmatmul.bf16.gmra.mxu0 %v602
  %v687 = vpop.f32.mrf.mxu0
  %v688 = vadd.f32 0.0, %v687
  %v689 = vpop.f32.mrf.mxu0
  %v690 = vadd.f32 0.0, %v689
  %691 = vmatmul.bf16.gmra.mxu0 %v603
  %v692 = vpop.f32.mrf.mxu0
  %v693 = vadd.f32 0.0, %v692
  %v694 = vpop.f32.mrf.mxu0
  %v695 = vadd.f32 0.0, %v694
  %696 = vmatmul.bf16.gmra.mxu0 %v604
  %v697 = vpop.f32.mrf.mxu0
  %v698 = vadd.f32 0.0, %v697
  %v699 = vpop.f32.mrf.mxu0
  %v700 = vadd.f32 0.0, %v699
  %701 = vmatmul.bf16.gmra.mxu0 %v605
  %v702 = vpop.f32.mrf.mxu0
  %v703 = vadd.f32 0.0, %v702
  %v704 = vpop.f32.mrf.mxu0
  %v705 = vadd.f32 0.0, %v704
  %706 = vmatmul.bf16.gmra.mxu0 %v606
  %v707 = vpop.f32.mrf.mxu0
  %v708 = vadd.f32 0.0, %v707
  %v709 = vpop.f32.mrf.mxu0
  %v710 = vadd.f32 0.0, %v709
  %711 = vmatmul.bf16.gmra.mxu0 %v607
  %v712 = vpop.f32.mrf.mxu0
  %v713 = vadd.f32 0.0, %v712
  %v714 = vpop.f32.mrf.mxu0
  %v715 = vadd.f32 0.0, %v714
  %716 = vmatmul.bf16.gmra.mxu0 %v608
  %v717 = vpop.f32.mrf.mxu0
  %v718 = vadd.f32 0.0, %v717
  %v719 = vpop.f32.mrf.mxu0
  %v720 = vadd.f32 0.0, %v719
  %721 = vmatmul.bf16.gmra.mxu0 %v609
  %v722 = vpop.f32.mrf.mxu0
  %v723 = vadd.f32 0.0, %v722
  %v724 = vpop.f32.mrf.mxu0
  %v725 = vadd.f32 0.0, %v724
  %726 = vmatmul.bf16.gmra.mxu0 %v610
  %v727 = vpop.f32.mrf.mxu0
  %v728 = vadd.f32 0.0, %v727
  %v729 = vpop.f32.mrf.mxu0
  %v730 = vadd.f32 0.0, %v729
  %731 = vmatmul.bf16.gmra.mxu0 %v611
  %v732 = vpop.f32.mrf.mxu0
  %v733 = vadd.f32 0.0, %v732
  %v734 = vpop.f32.mrf.mxu0
  %v735 = vadd.f32 0.0, %v734
  %736 = vmatmul.bf16.gmra.mxu0 %v612
  %v737 = vpop.f32.mrf.mxu0
  %v738 = vadd.f32 0.0, %v737
  %v739 = vpop.f32.mrf.mxu0
  %v740 = vadd.f32 0.0, %v739
  %741 = vmatmul.bf16.gmra.mxu0 %v613
  %v742 = vpop.f32.mrf.mxu0
  %v743 = vadd.f32 0.0, %v742
  %v744 = vpop.f32.mrf.mxu0
  %v745 = vadd.f32 0.0, %v744
  %746 = vmatmul.bf16.gmra.mxu0 %v614
  %v747 = vpop.f32.mrf.mxu0
  %v748 = vadd.f32 0.0, %v747
  %v749 = vpop.f32.mrf.mxu0
  %v750 = vadd.f32 0.0, %v749
  %751 = vdwg.mxu0
  %752 = vmatpush.bf16.msra.mxu0 %v662
  %753 = vmatpush.bf16.msra.mxu0 %v660
  %754 = vmatpush.bf16.msra.mxu0 %v658
  %755 = vmatpush.bf16.msra.mxu0 %v656
  %756 = vmatpush.bf16.msra.mxu0 %v654
  %757 = vmatpush.bf16.msra.mxu0 %v652
  %758 = vmatpush.bf16.msra.mxu0 %v650
  %759 = vmatpush.bf16.msra.mxu0 %v648
  %760 = vmatmul.bf16.gmra.mxu0 %v599
  %v761 = vpop.f32.mrf.mxu0
  %v762 = vadd.f32 0.0, %v761
  %v763 = vpop.f32.mrf.mxu0
  %v764 = vadd.f32 0.0, %v763
  %765 = vmatmul.bf16.gmra.mxu0 %v600
  %v766 = vpop.f32.mrf.mxu0
  %v767 = vadd.f32 0.0, %v766
  %v768 = vpop.f32.mrf.mxu0
  %v769 = vadd.f32 0.0, %v768
  %770 = vmatmul.bf16.gmra.mxu0 %v601
  %v771 = vpop.f32.mrf.mxu0
  %v772 = vadd.f32 0.0, %v771
  %v773 = vpop.f32.mrf.mxu0
  %v774 = vadd.f32 0.0, %v773
  %775 = vmatmul.bf16.gmra.mxu0 %v602
  %v776 = vpop.f32.mrf.mxu0
  %v777 = vadd.f32 0.0, %v776
  %v778 = vpop.f32.mrf.mxu0
  %v779 = vadd.f32 0.0, %v778
  %780 = vmatmul.bf16.gmra.mxu0 %v603
  %v781 = vpop.f32.mrf.mxu0
  %v782 = vadd.f32 0.0, %v781
  %v783 = vpop.f32.mrf.mxu0
  %v784 = vadd.f32 0.0, %v783
  %785 = vmatmul.bf16.gmra.mxu0 %v604
  %v786 = vpop.f32.mrf.mxu0
  %v787 = vadd.f32 0.0, %v786
  %v788 = vpop.f32.mrf.mxu0
  %v789 = vadd.f32 0.0, %v788
  %790 = vmatmul.bf16.gmra.mxu0 %v605
  %v791 = vpop.f32.mrf.mxu0
  %v792 = vadd.f32 0.0, %v791
  %v793 = vpop.f32.mrf.mxu0
  %v794 = vadd.f32 0.0, %v793
  %795 = vmatmul.bf16.gmra.mxu0 %v606
  %v796 = vpop.f32.mrf.mxu0
  %v797 = vadd.f32 0.0, %v796
  %v798 = vpop.f32.mrf.mxu0
  %v799 = vadd.f32 0.0, %v798
  %800 = vmatmul.bf16.gmra.mxu0 %v607
  %v801 = vpop.f32.mrf.mxu0
  %v802 = vadd.f32 0.0, %v801
  %v803 = vpop.f32.mrf.mxu0
  %v804 = vadd.f32 0.0, %v803
  %805 = vmatmul.bf16.gmra.mxu0 %v608
  %v806 = vpop.f32.mrf.mxu0
  %v807 = vadd.f32 0.0, %v806
  %v808 = vpop.f32.mrf.mxu0
  %v809 = vadd.f32 0.0, %v808
  %810 = vmatmul.bf16.gmra.mxu0 %v609
  %v811 = vpop.f32.mrf.mxu0
  %v812 = vadd.f32 0.0, %v811
  %v813 = vpop.f32.mrf.mxu0
  %v814 = vadd.f32 0.0, %v813
  %815 = vmatmul.bf16.gmra.mxu0 %v610
  %v816 = vpop.f32.mrf.mxu0
  %v817 = vadd.f32 0.0, %v816
  %v818 = vpop.f32.mrf.mxu0
  %v819 = vadd.f32 0.0, %v818
  %820 = vmatmul.bf16.gmra.mxu0 %v611
  %v821 = vpop.f32.mrf.mxu0
  %v822 = vadd.f32 0.0, %v821
  %v823 = vpop.f32.mrf.mxu0
  %v824 = vadd.f32 0.0, %v823
  %825 = vmatmul.bf16.gmra.mxu0 %v612
  %v826 = vpop.f32.mrf.mxu0
  %v827 = vadd.f32 0.0, %v826
  %v828 = vpop.f32.mrf.mxu0
  %v829 = vadd.f32 0.0, %v828
  %830 = vmatmul.bf16.gmra.mxu0 %v613
  %v831 = vpop.f32.mrf.mxu0
  %v832 = vadd.f32 0.0, %v831
  %v833 = vpop.f32.mrf.mxu0
  %v834 = vadd.f32 0.0, %v833
  %835 = vmatmul.bf16.gmra.mxu0 %v614
  %v836 = vpop.f32.mrf.mxu0
  %v837 = vadd.f32 0.0, %v836
  %v838 = vpop.f32.mrf.mxu0
  %v839 = vadd.f32 0.0, %v838
  %840 = vdwg.mxu0
  %v841 = vpack.c.bf16 %v762, %v673
  %v842 = vpack.c.bf16 %v764, %v675
  %v843 = vpack.c.bf16 %v767, %v678
  %v844 = vpack.c.bf16 %v769, %v680
  %v845 = vpack.c.bf16 %v772, %v683
  %v846 = vpack.c.bf16 %v774, %v685
  %v847 = vpack.c.bf16 %v777, %v688
  %v848 = vpack.c.bf16 %v779, %v690
  %v849 = vpack.c.bf16 %v782, %v693
  %v850 = vpack.c.bf16 %v784, %v695
  %v851 = vpack.c.bf16 %v787, %v698
  %v852 = vpack.c.bf16 %v789, %v700
  %v853 = vpack.c.bf16 %v792, %v703
  %v854 = vpack.c.bf16 %v794, %v705
  %v855 = vpack.c.bf16 %v797, %v708
  %v856 = vpack.c.bf16 %v799, %v710
  %v857 = vpack.c.bf16 %v802, %v713
  %v858 = vpack.c.bf16 %v804, %v715
  %v859 = vpack.c.bf16 %v807, %v718
  %v860 = vpack.c.bf16 %v809, %v720
  %v861 = vpack.c.bf16 %v812, %v723
  %v862 = vpack.c.bf16 %v814, %v725
  %v863 = vpack.c.bf16 %v817, %v728
  %v864 = vpack.c.bf16 %v819, %v730
  %v865 = vpack.c.bf16 %v822, %v733
  %v866 = vpack.c.bf16 %v824, %v735
  %v867 = vpack.c.bf16 %v827, %v738
  %v868 = vpack.c.bf16 %v829, %v740
  %v869 = vpack.c.bf16 %v832, %v743
  %v870 = vpack.c.bf16 %v834, %v745
  %v871 = vpack.c.bf16 %v837, %v748
  %v872 = vpack.c.bf16 %v839, %v750
  %v889 = vunpack.c.l.b16 %v841
  %v890 = vunpack.c.h.b16 %v841
  %v891 = vunpack.c.l.b16 %v842
  %v892 = vunpack.c.h.b16 %v842
  %v893 = vunpack.c.l.b16 %v843
  %v894 = vunpack.c.h.b16 %v843
  %v895 = vunpack.c.l.b16 %v844
  %v896 = vunpack.c.h.b16 %v844
  %v897 = vunpack.c.l.b16 %v845
  %v898 = vunpack.c.h.b16 %v845
  %v899 = vunpack.c.l.b16 %v846
  %v900 = vunpack.c.h.b16 %v846
  %v901 = vunpack.c.l.b16 %v847
  %v902 = vunpack.c.h.b16 %v847
  %v903 = vunpack.c.l.b16 %v848
  %v904 = vunpack.c.h.b16 %v848
  %v905 = vunpack.c.l.b16 %v849
  %v906 = vunpack.c.h.b16 %v849
  %v907 = vunpack.c.l.b16 %v850
  %v908 = vunpack.c.h.b16 %v850
  %v909 = vunpack.c.l.b16 %v851
  %v910 = vunpack.c.h.b16 %v851
  %v911 = vunpack.c.l.b16 %v852
  %v912 = vunpack.c.h.b16 %v852
  %v913 = vunpack.c.l.b16 %v853
  %v914 = vunpack.c.h.b16 %v853
  %v915 = vunpack.c.l.b16 %v854
  %v916 = vunpack.c.h.b16 %v854
  %v917 = vunpack.c.l.b16 %v855
  %v918 = vunpack.c.h.b16 %v855
  %v919 = vunpack.c.l.b16 %v856
  %v920 = vunpack.c.h.b16 %v856
  %v921 = vpack.c.b16 %v891, %v889
  %v922 = vpack.c.b16 %v892, %v890
  %v923 = vpack.c.b16 %v895, %v893
  %v924 = vpack.c.b16 %v896, %v894
  %v925 = vpack.c.b16 %v899, %v897
  %v926 = vpack.c.b16 %v900, %v898
  %v927 = vpack.c.b16 %v903, %v901
  %v928 = vpack.c.b16 %v904, %v902
  %v929 = vpack.c.b16 %v907, %v905
  %v930 = vpack.c.b16 %v908, %v906
  %v931 = vpack.c.b16 %v911, %v909
  %v932 = vpack.c.b16 %v912, %v910
  %v933 = vpack.c.b16 %v915, %v913
  %v934 = vpack.c.b16 %v916, %v914
  %v935 = vpack.c.b16 %v919, %v917
  %v936 = vpack.c.b16 %v920, %v918
  %953 = vmatpush.bf16.msra.mxu0 %v935
  %954 = vmatpush.bf16.msra.mxu0 %v933
  %955 = vmatpush.bf16.msra.mxu0 %v931
  %956 = vmatpush.bf16.msra.mxu0 %v929
  %957 = vmatpush.bf16.msra.mxu0 %v927
  %958 = vmatpush.bf16.msra.mxu0 %v925
  %959 = vmatpush.bf16.msra.mxu0 %v923
  %960 = vmatpush.bf16.msra.mxu0 %v921
  %961 = vmatmul.bf16.gmra.mxu0 %v309
  %v962 = vpop.f32.mrf.mxu0
  %v963 = vadd.f32 0.0, %v962
  %v964 = vpop.f32.mrf.mxu0
  %v965 = vadd.f32 0.0, %v964
  %966 = vmatmul.bf16.gmra.mxu0 %v310
  %v967 = vpop.f32.mrf.mxu0
  %v968 = vadd.f32 0.0, %v967
  %v969 = vpop.f32.mrf.mxu0
  %v970 = vadd.f32 0.0, %v969
  %971 = vmatmul.bf16.gmra.mxu0 %v311
  %v972 = vpop.f32.mrf.mxu0
  %v973 = vadd.f32 0.0, %v972
  %v974 = vpop.f32.mrf.mxu0
  %v975 = vadd.f32 0.0, %v974
  %976 = vmatmul.bf16.gmra.mxu0 %v312
  %v977 = vpop.f32.mrf.mxu0
  %v978 = vadd.f32 0.0, %v977
  %v979 = vpop.f32.mrf.mxu0
  %v980 = vadd.f32 0.0, %v979
  %981 = vmatmul.bf16.gmra.mxu0 %v313
  %v982 = vpop.f32.mrf.mxu0
  %v983 = vadd.f32 0.0, %v982
  %v984 = vpop.f32.mrf.mxu0
  %v985 = vadd.f32 0.0, %v984
  %986 = vmatmul.bf16.gmra.mxu0 %v314
  %v987 = vpop.f32.mrf.mxu0
  %v988 = vadd.f32 0.0, %v987
  %v989 = vpop.f32.mrf.mxu0
  %v990 = vadd.f32 0.0, %v989
  %991 = vmatmul.bf16.gmra.mxu0 %v315
  %v992 = vpop.f32.mrf.mxu0
  %v993 = vadd.f32 0.0, %v992
  %v994 = vpop.f32.mrf.mxu0
  %v995 = vadd.f32 0.0, %v994
  %996 = vmatmul.bf16.gmra.mxu0 %v316
  %v997 = vpop.f32.mrf.mxu0
  %v998 = vadd.f32 0.0, %v997
  %v999 = vpop.f32.mrf.mxu0
  %v1000 = vadd.f32 0.0, %v999
  %1001 = vdwg.mxu0
  %1002 = vmatpush.bf16.msra.mxu0 %v936
  %1003 = vmatpush.bf16.msra.mxu0 %v934
  %1004 = vmatpush.bf16.msra.mxu0 %v932
  %1005 = vmatpush.bf16.msra.mxu0 %v930
  %1006 = vmatpush.bf16.msra.mxu0 %v928
  %1007 = vmatpush.bf16.msra.mxu0 %v926
  %1008 = vmatpush.bf16.msra.mxu0 %v924
  %1009 = vmatpush.bf16.msra.mxu0 %v922
  %1010 = vmatmul.bf16.gmra.mxu0 %v309
  %v1011 = vpop.f32.mrf.mxu0
  %v1012 = vadd.f32 0.0, %v1011
  %v1013 = vpop.f32.mrf.mxu0
  %v1014 = vadd.f32 0.0, %v1013
  %1015 = vmatmul.bf16.gmra.mxu0 %v310
  %v1016 = vpop.f32.mrf.mxu0
  %v1017 = vadd.f32 0.0, %v1016
  %v1018 = vpop.f32.mrf.mxu0
  %v1019 = vadd.f32 0.0, %v1018
  %1020 = vmatmul.bf16.gmra.mxu0 %v311
  %v1021 = vpop.f32.mrf.mxu0
  %v1022 = vadd.f32 0.0, %v1021
  %v1023 = vpop.f32.mrf.mxu0
  %v1024 = vadd.f32 0.0, %v1023
  %1025 = vmatmul.bf16.gmra.mxu0 %v312
  %v1026 = vpop.f32.mrf.mxu0
  %v1027 = vadd.f32 0.0, %v1026
  %v1028 = vpop.f32.mrf.mxu0
  %v1029 = vadd.f32 0.0, %v1028
  %1030 = vmatmul.bf16.gmra.mxu0 %v313
  %v1031 = vpop.f32.mrf.mxu0
  %v1032 = vadd.f32 0.0, %v1031
  %v1033 = vpop.f32.mrf.mxu0
  %v1034 = vadd.f32 0.0, %v1033
  %1035 = vmatmul.bf16.gmra.mxu0 %v314
  %v1036 = vpop.f32.mrf.mxu0
  %v1037 = vadd.f32 0.0, %v1036
  %v1038 = vpop.f32.mrf.mxu0
  %v1039 = vadd.f32 0.0, %v1038
  %1040 = vmatmul.bf16.gmra.mxu0 %v315
  %v1041 = vpop.f32.mrf.mxu0
  %v1042 = vadd.f32 0.0, %v1041
  %v1043 = vpop.f32.mrf.mxu0
  %v1044 = vadd.f32 0.0, %v1043
  %1045 = vmatmul.bf16.gmra.mxu0 %v316
  %v1046 = vpop.f32.mrf.mxu0
  %v1047 = vadd.f32 0.0, %v1046
  %v1048 = vpop.f32.mrf.mxu0
  %v1049 = vadd.f32 0.0, %v1048
  %1050 = vdwg.mxu0
  %v1067 = vunpack.c.l.b16 %v857
  %v1068 = vunpack.c.h.b16 %v857
  %v1069 = vunpack.c.l.b16 %v858
  %v1070 = vunpack.c.h.b16 %v858
  %v1071 = vunpack.c.l.b16 %v859
  %v1072 = vunpack.c.h.b16 %v859
  %v1073 = vunpack.c.l.b16 %v860
  %v1074 = vunpack.c.h.b16 %v860
  %v1075 = vunpack.c.l.b16 %v861
  %v1076 = vunpack.c.h.b16 %v861
  %v1077 = vunpack.c.l.b16 %v862
  %v1078 = vunpack.c.h.b16 %v862
  %v1079 = vunpack.c.l.b16 %v863
  %v1080 = vunpack.c.h.b16 %v863
  %v1081 = vunpack.c.l.b16 %v864
  %v1082 = vunpack.c.h.b16 %v864
  %v1083 = vunpack.c.l.b16 %v865
  %v1084 = vunpack.c.h.b16 %v865
  %v1085 = vunpack.c.l.b16 %v866
  %v1086 = vunpack.c.h.b16 %v866
  %v1087 = vunpack.c.l.b16 %v867
  %v1088 = vunpack.c.h.b16 %v867
  %v1089 = vunpack.c.l.b16 %v868
  %v1090 = vunpack.c.h.b16 %v868
  %v1091 = vunpack.c.l.b16 %v869
  %v1092 = vunpack.c.h.b16 %v869
  %v1093 = vunpack.c.l.b16 %v870
  %v1094 = vunpack.c.h.b16 %v870
  %v1095 = vunpack.c.l.b16 %v871
  %v1096 = vunpack.c.h.b16 %v871
  %v1097 = vunpack.c.l.b16 %v872
  %v1098 = vunpack.c.h.b16 %v872
  %v1099 = vpack.c.b16 %v1069, %v1067
  %v1100 = vpack.c.b16 %v1070, %v1068
  %v1101 = vpack.c.b16 %v1073, %v1071
  %v1102 = vpack.c.b16 %v1074, %v1072
  %v1103 = vpack.c.b16 %v1077, %v1075
  %v1104 = vpack.c.b16 %v1078, %v1076
  %v1105 = vpack.c.b16 %v1081, %v1079
  %v1106 = vpack.c.b16 %v1082, %v1080
  %v1107 = vpack.c.b16 %v1085, %v1083
  %v1108 = vpack.c.b16 %v1086, %v1084
  %v1109 = vpack.c.b16 %v1089, %v1087
  %v1110 = vpack.c.b16 %v1090, %v1088
  %v1111 = vpack.c.b16 %v1093, %v1091
  %v1112 = vpack.c.b16 %v1094, %v1092
  %v1113 = vpack.c.b16 %v1097, %v1095
  %v1114 = vpack.c.b16 %v1098, %v1096
  %1131 = vmatpush.bf16.msra.mxu0 %v1113
  %1132 = vmatpush.bf16.msra.mxu0 %v1111
  %1133 = vmatpush.bf16.msra.mxu0 %v1109
  %1134 = vmatpush.bf16.msra.mxu0 %v1107
  %1135 = vmatpush.bf16.msra.mxu0 %v1105
  %1136 = vmatpush.bf16.msra.mxu0 %v1103
  %1137 = vmatpush.bf16.msra.mxu0 %v1101
  %1138 = vmatpush.bf16.msra.mxu0 %v1099
  %1139 = vmatmul.bf16.gmra.mxu0 %v454
  %v1140 = vpop.f32.mrf.mxu0
  %v1141 = vadd.f32 0.0, %v1140
  %v1142 = vpop.f32.mrf.mxu0
  %v1143 = vadd.f32 0.0, %v1142
  %1144 = vmatmul.bf16.gmra.mxu0 %v455
  %v1145 = vpop.f32.mrf.mxu0
  %v1146 = vadd.f32 0.0, %v1145
  %v1147 = vpop.f32.mrf.mxu0
  %v1148 = vadd.f32 0.0, %v1147
  %1149 = vmatmul.bf16.gmra.mxu0 %v456
  %v1150 = vpop.f32.mrf.mxu0
  %v1151 = vadd.f32 0.0, %v1150
  %v1152 = vpop.f32.mrf.mxu0
  %v1153 = vadd.f32 0.0, %v1152
  %1154 = vmatmul.bf16.gmra.mxu0 %v457
  %v1155 = vpop.f32.mrf.mxu0
  %v1156 = vadd.f32 0.0, %v1155
  %v1157 = vpop.f32.mrf.mxu0
  %v1158 = vadd.f32 0.0, %v1157
  %1159 = vmatmul.bf16.gmra.mxu0 %v458
  %v1160 = vpop.f32.mrf.mxu0
  %v1161 = vadd.f32 0.0, %v1160
  %v1162 = vpop.f32.mrf.mxu0
  %v1163 = vadd.f32 0.0, %v1162
  %1164 = vmatmul.bf16.gmra.mxu0 %v459
  %v1165 = vpop.f32.mrf.mxu0
  %v1166 = vadd.f32 0.0, %v1165
  %v1167 = vpop.f32.mrf.mxu0
  %v1168 = vadd.f32 0.0, %v1167
  %1169 = vmatmul.bf16.gmra.mxu0 %v460
  %v1170 = vpop.f32.mrf.mxu0
  %v1171 = vadd.f32 0.0, %v1170
  %v1172 = vpop.f32.mrf.mxu0
  %v1173 = vadd.f32 0.0, %v1172
  %1174 = vmatmul.bf16.gmra.mxu0 %v461
  %v1175 = vpop.f32.mrf.mxu0
  %v1176 = vadd.f32 0.0, %v1175
  %v1177 = vpop.f32.mrf.mxu0
  %v1178 = vadd.f32 0.0, %v1177
  %1179 = vdwg.mxu0
  %1180 = vmatpush.bf16.msra.mxu0 %v1114
  %1181 = vmatpush.bf16.msra.mxu0 %v1112
  %1182 = vmatpush.bf16.msra.mxu0 %v1110
  %1183 = vmatpush.bf16.msra.mxu0 %v1108
  %1184 = vmatpush.bf16.msra.mxu0 %v1106
  %1185 = vmatpush.bf16.msra.mxu0 %v1104
  %1186 = vmatpush.bf16.msra.mxu0 %v1102
  %1187 = vmatpush.bf16.msra.mxu0 %v1100
  %1188 = vmatmul.bf16.gmra.mxu0 %v454
  %v1189 = vpop.f32.mrf.mxu0
  %v1190 = vadd.f32 0.0, %v1189
  %v1191 = vpop.f32.mrf.mxu0
  %v1192 = vadd.f32 0.0, %v1191
  %1193 = vmatmul.bf16.gmra.mxu0 %v455
  %v1194 = vpop.f32.mrf.mxu0
  %v1195 = vadd.f32 0.0, %v1194
  %v1196 = vpop.f32.mrf.mxu0
  %v1197 = vadd.f32 0.0, %v1196
  %1198 = vmatmul.bf16.gmra.mxu0 %v456
  %v1199 = vpop.f32.mrf.mxu0
  %v1200 = vadd.f32 0.0, %v1199
  %v1201 = vpop.f32.mrf.mxu0
  %v1202 = vadd.f32 0.0, %v1201
  %1203 = vmatmul.bf16.gmra.mxu0 %v457
  %v1204 = vpop.f32.mrf.mxu0
  %v1205 = vadd.f32 0.0, %v1204
  %v1206 = vpop.f32.mrf.mxu0
  %v1207 = vadd.f32 0.0, %v1206
  %1208 = vmatmul.bf16.gmra.mxu0 %v458
  %v1209 = vpop.f32.mrf.mxu0
  %v1210 = vadd.f32 0.0, %v1209
  %v1211 = vpop.f32.mrf.mxu0
  %v1212 = vadd.f32 0.0, %v1211
  %1213 = vmatmul.bf16.gmra.mxu0 %v459
  %v1214 = vpop.f32.mrf.mxu0
  %v1215 = vadd.f32 0.0, %v1214
  %v1216 = vpop.f32.mrf.mxu0
  %v1217 = vadd.f32 0.0, %v1216
  %1218 = vmatmul.bf16.gmra.mxu0 %v460
  %v1219 = vpop.f32.mrf.mxu0
  %v1220 = vadd.f32 0.0, %v1219
  %v1221 = vpop.f32.mrf.mxu0
  %v1222 = vadd.f32 0.0, %v1221
  %1223 = vmatmul.bf16.gmra.mxu0 %v461
  %v1224 = vpop.f32.mrf.mxu0
  %v1225 = vadd.f32 0.0, %v1224
  %v1226 = vpop.f32.mrf.mxu0
  %v1227 = vadd.f32 0.0, %v1226
  %1228 = vdwg.mxu0
  %v1229 = vld [vmem:[%s4] sm:$0xff]
  %v1230 = vld [vmem:[%s4 + $0x8] sm:$0xff]
  %v1231 = vld [vmem:[%s4 + $0x10] sm:$0xff]
  %v1232 = vld [vmem:[%s4 + $0x18] sm:$0xff]
  %v1233 = vld [vmem:[%s4 + $0x20] sm:$0xff]
  %v1234 = vld [vmem:[%s4 + $0x28] sm:$0xff]
  %v1235 = vld [vmem:[%s4 + $0x30] sm:$0xff]
  %v1236 = vld [vmem:[%s4 + $0x38] sm:$0xff]
  %v1237 = vld [vmem:[%s4 + $0x40] sm:$0xff]
  %v1238 = vld [vmem:[%s4 + $0x48] sm:$0xff]
  %v1239 = vld [vmem:[%s4 + $0x50] sm:$0xff]
  %v1240 = vld [vmem:[%s4 + $0x58] sm:$0xff]
  %v1241 = vld [vmem:[%s4 + $0x60] sm:$0xff]
  %v1242 = vld [vmem:[%s4 + $0x68] sm:$0xff]
  %v1243 = vld [vmem:[%s4 + $0x70] sm:$0xff]
  %v1244 = vld [vmem:[%s4 + $0x78] sm:$0xff]
  %v1245 = vld [vmem:[%s4 + $0x80] sm:$0xff]
  %v1246 = vld [vmem:[%s4 + $0x88] sm:$0xff]
  %v1247 = vld [vmem:[%s4 + $0x90] sm:$0xff]
  %v1248 = vld [vmem:[%s4 + $0x98] sm:$0xff]
  %v1249 = vld [vmem:[%s4 + $0xa0] sm:$0xff]
  %v1250 = vld [vmem:[%s4 + $0xa8] sm:$0xff]
  %v1251 = vld [vmem:[%s4 + $0xb0] sm:$0xff]
  %v1252 = vld [vmem:[%s4 + $0xb8] sm:$0xff]
  %v1253 = vld [vmem:[%s4 + $0xc0] sm:$0xff]
  %v1254 = vld [vmem:[%s4 + $0xc8] sm:$0xff]
  %v1255 = vld [vmem:[%s4 + $0xd0] sm:$0xff]
  %v1256 = vld [vmem:[%s4 + $0xd8] sm:$0xff]
  %v1257 = vld [vmem:[%s4 + $0xe0] sm:$0xff]
  %v1258 = vld [vmem:[%s4 + $0xe8] sm:$0xff]
  %v1259 = vld [vmem:[%s4 + $0xf0] sm:$0xff]
  %v1260 = vld [vmem:[%s4 + $0xf8] sm:$0xff]
  %v1261 = vmul.f32 %v1012, 1.442695
  %v1262 = vpow.pop %v1261
  %v1263 = vmul.f32 %v1014, 1.442695
  %v1264 = vpow.pop %v1263
  %v1265 = vmul.f32 %v1017, 1.442695
  %v1266 = vpow.pop %v1265
  %v1267 = vmul.f32 %v1019, 1.442695
  %v1268 = vpow.pop %v1267
  %v1269 = vmul.f32 %v1022, 1.442695
  %v1270 = vpow.pop %v1269
  %v1271 = vmul.f32 %v1024, 1.442695
  %v1272 = vpow.pop %v1271
  %v1273 = vmul.f32 %v1027, 1.442695
  %v1274 = vpow.pop %v1273
  %v1275 = vmul.f32 %v1029, 1.442695
  %v1276 = vpow.pop %v1275
  %v1277 = vmul.f32 %v1032, 1.442695
  %v1278 = vpow.pop %v1277
  %v1279 = vmul.f32 %v1034, 1.442695
  %v1280 = vpow.pop %v1279
  %v1281 = vmul.f32 %v1037, 1.442695
  %v1282 = vpow.pop %v1281
  %v1283 = vmul.f32 %v1039, 1.442695
  %v1284 = vpow.pop %v1283
  %v1285 = vmul.f32 %v1042, 1.442695
  %v1286 = vpow.pop %v1285
  %v1287 = vmul.f32 %v1044, 1.442695
  %v1288 = vpow.pop %v1287
  %v1289 = vmul.f32 %v1047, 1.442695
  %v1290 = vpow.pop %v1289
  %v1291 = vmul.f32 %v1049, 1.442695
  %v1292 = vpow.pop %v1291
  %v1293 = vmul.f32 %v1190, 1.442695
  %v1294 = vpow.pop %v1293
  %v1295 = vmul.f32 %v1192, 1.442695
  %v1296 = vpow.pop %v1295
  %v1297 = vmul.f32 %v1195, 1.442695
  %v1298 = vpow.pop %v1297
  %v1299 = vmul.f32 %v1197, 1.442695
  %v1300 = vpow.pop %v1299
  %v1301 = vmul.f32 %v1200, 1.442695
  %v1302 = vpow.pop %v1301
  %v1303 = vmul.f32 %v1202, 1.442695
  %v1304 = vpow.pop %v1303
  %v1305 = vmul.f32 %v1205, 1.442695
  %v1306 = vpow.pop %v1305
  %v1307 = vmul.f32 %v1207, 1.442695
  %v1308 = vpow.pop %v1307
  %v1309 = vmul.f32 %v1210, 1.442695
  %v1310 = vpow.pop %v1309
  %v1311 = vmul.f32 %v1212, 1.442695
  %v1312 = vpow.pop %v1311
  %v1313 = vmul.f32 %v1215, 1.442695
  %v1314 = vpow.pop %v1313
  %v1315 = vmul.f32 %v1217, 1.442695
  %v1316 = vpow.pop %v1315
  %v1317 = vmul.f32 %v1220, 1.442695
  %v1318 = vpow.pop %v1317
  %v1319 = vmul.f32 %v1222, 1.442695
  %v1320 = vpow.pop %v1319
  %v1321 = vmul.f32 %v1225, 1.442695
  %v1322 = vpow.pop %v1321
  %v1323 = vmul.f32 %v1227, 1.442695
  %v1324 = vpow.pop %v1323
  %v1325 = vmul.f32 %v1229, %v1262
  %v1326 = vmul.f32 %v1230, %v1264
  %v1327 = vmul.f32 %v1231, %v1266
  %v1328 = vmul.f32 %v1232, %v1268
  %v1329 = vmul.f32 %v1233, %v1270
  %v1330 = vmul.f32 %v1234, %v1272
  %v1331 = vmul.f32 %v1235, %v1274
  %v1332 = vmul.f32 %v1236, %v1276
  %v1333 = vmul.f32 %v1237, %v1278
  %v1334 = vmul.f32 %v1238, %v1280
  %v1335 = vmul.f32 %v1239, %v1282
  %v1336 = vmul.f32 %v1240, %v1284
  %v1337 = vmul.f32 %v1241, %v1286
  %v1338 = vmul.f32 %v1242, %v1288
  %v1339 = vmul.f32 %v1243, %v1290
  %v1340 = vmul.f32 %v1244, %v1292
  %v1341 = vmul.f32 %v1245, %v1294
  %v1342 = vmul.f32 %v1246, %v1296
  %v1343 = vmul.f32 %v1247, %v1298
  %v1344 = vmul.f32 %v1248, %v1300
  %v1345 = vmul.f32 %v1249, %v1302
  %v1346 = vmul.f32 %v1250, %v1304
  %v1347 = vmul.f32 %v1251, %v1306
  %v1348 = vmul.f32 %v1252, %v1308
  %v1349 = vmul.f32 %v1253, %v1310
  %v1350 = vmul.f32 %v1254, %v1312
  %v1351 = vmul.f32 %v1255, %v1314
  %v1352 = vmul.f32 %v1256, %v1316
  %v1353 = vmul.f32 %v1257, %v1318
  %v1354 = vmul.f32 %v1258, %v1320
  %v1355 = vmul.f32 %v1259, %v1322
  %v1356 = vmul.f32 %v1260, %v1324
  %v1357 = vadd.f32 %v1325, %v963
  %v1358 = vadd.f32 %v1326, %v965
  %v1359 = vadd.f32 %v1327, %v968
  %v1360 = vadd.f32 %v1328, %v970
  %v1361 = vadd.f32 %v1329, %v973
  %v1362 = vadd.f32 %v1330, %v975
  %v1363 = vadd.f32 %v1331, %v978
  %v1364 = vadd.f32 %v1332, %v980
  %v1365 = vadd.f32 %v1333, %v983
  %v1366 = vadd.f32 %v1334, %v985
  %v1367 = vadd.f32 %v1335, %v988
  %v1368 = vadd.f32 %v1336, %v990
  %v1369 = vadd.f32 %v1337, %v993
  %v1370 = vadd.f32 %v1338, %v995
  %v1371 = vadd.f32 %v1339, %v998
  %v1372 = vadd.f32 %v1340, %v1000
  %v1373 = vadd.f32 %v1341, %v1141
  %v1374 = vadd.f32 %v1342, %v1143
  %v1375 = vadd.f32 %v1343, %v1146
  %v1376 = vadd.f32 %v1344, %v1148
  %v1377 = vadd.f32 %v1345, %v1151
  %v1378 = vadd.f32 %v1346, %v1153
  %v1379 = vadd.f32 %v1347, %v1156
  %v1380 = vadd.f32 %v1348, %v1158
  %v1381 = vadd.f32 %v1349, %v1161
  %v1382 = vadd.f32 %v1350, %v1163
  %v1383 = vadd.f32 %v1351, %v1166
  %v1384 = vadd.f32 %v1352, %v1168
  %v1385 = vadd.f32 %v1353, %v1171
  %v1386 = vadd.f32 %v1354, %v1173
  %v1387 = vadd.f32 %v1355, %v1176
  %v1388 = vadd.f32 %v1356, %v1178
  %v1389 = vpack.c.bf16 %v1357, %v1357
  %v1390 = vpack.c.bf16 %v1358, %v1358
  %v1391 = vpack.c.bf16 %v1359, %v1359
  %v1392 = vpack.c.bf16 %v1360, %v1360
  %v1393 = vpack.c.bf16 %v1361, %v1361
  %v1394 = vpack.c.bf16 %v1362, %v1362
  %v1395 = vpack.c.bf16 %v1363, %v1363
  %v1396 = vpack.c.bf16 %v1364, %v1364
  %v1397 = vpack.c.bf16 %v1365, %v1365
  %v1398 = vpack.c.bf16 %v1366, %v1366
  %v1399 = vpack.c.bf16 %v1367, %v1367
  %v1400 = vpack.c.bf16 %v1368, %v1368
  %v1401 = vpack.c.bf16 %v1369, %v1369
  %v1402 = vpack.c.bf16 %v1370, %v1370
  %v1403 = vpack.c.bf16 %v1371, %v1371
  %v1404 = vpack.c.bf16 %v1372, %v1372
  %v1405 = vpack.c.bf16 %v1373, %v1373
  %v1406 = vpack.c.bf16 %v1374, %v1374
  %v1407 = vpack.c.bf16 %v1375, %v1375
  %v1408 = vpack.c.bf16 %v1376, %v1376
  %v1409 = vpack.c.bf16 %v1377, %v1377
  %v1410 = vpack.c.bf16 %v1378, %v1378
  %v1411 = vpack.c.bf16 %v1379, %v1379
  %v1412 = vpack.c.bf16 %v1380, %v1380
  %v1413 = vpack.c.bf16 %v1381, %v1381
  %v1414 = vpack.c.bf16 %v1382, %v1382
  %v1415 = vpack.c.bf16 %v1383, %v1383
  %v1416 = vpack.c.bf16 %v1384, %v1384
  %v1417 = vpack.c.bf16 %v1385, %v1385
  %v1418 = vpack.c.bf16 %v1386, %v1386
  %v1419 = vpack.c.bf16 %v1387, %v1387
  %v1420 = vpack.c.bf16 %v1388, %v1388
  %v1437 = vunpack.c.l.b16 %v1389
  %v1438 = vunpack.c.l.b16 %v1390
  %v1439 = vunpack.c.l.b16 %v1391
  %v1440 = vunpack.c.l.b16 %v1392
  %v1441 = vunpack.c.l.b16 %v1393
  %v1442 = vunpack.c.l.b16 %v1394
  %v1443 = vunpack.c.l.b16 %v1395
  %v1444 = vunpack.c.l.b16 %v1396
  %v1445 = vunpack.c.l.b16 %v1397
  %v1446 = vunpack.c.l.b16 %v1398
  %v1447 = vunpack.c.l.b16 %v1399
  %v1448 = vunpack.c.l.b16 %v1400
  %v1449 = vunpack.c.l.b16 %v1401
  %v1450 = vunpack.c.l.b16 %v1402
  %v1451 = vunpack.c.l.b16 %v1403
  %v1452 = vunpack.c.l.b16 %v1404
  %v1453 = vpack.c.b16 %v1438, %v1437
  %v1454 = vpack.c.b16 %v1440, %v1439
  %v1455 = vpack.c.b16 %v1442, %v1441
  %v1456 = vpack.c.b16 %v1444, %v1443
  %v1457 = vpack.c.b16 %v1446, %v1445
  %v1458 = vpack.c.b16 %v1448, %v1447
  %v1459 = vpack.c.b16 %v1450, %v1449
  %v1460 = vpack.c.b16 %v1452, %v1451
  %1469 = vmatpush.bf16.xpose.msra.mxu0 %v1460
  %1470 = vmatpush.bf16.xpose.msra.mxu0 %v1459
  %1471 = vmatpush.bf16.xpose.msra.mxu0 %v1458
  %1472 = vmatpush.bf16.xpose.msra.mxu0 %v1457
  %1473 = vmatpush.bf16.xpose.msra.mxu0 %v1456
  %1474 = vmatpush.bf16.xpose.msra.mxu0 %v1455
  %1475 = vmatpush.bf16.xpose.msra.mxu0 %v1454
  %1476 = vmatpush.bf16.xpose.msra.mxu0 %v1453
  %1477 = vmatmul.bf16.gmra.mxu0 %v1453
  %v1478 = vpop.f32.mrf.mxu0
  %v1479 = vadd.f32 0.0, %v1478
  %v1480 = vpop.f32.mrf.mxu0
  %v1481 = vadd.f32 0.0, %v1480
  %1482 = vmatmul.bf16.gmra.mxu0 %v1454
  %v1483 = vpop.f32.mrf.mxu0
  %v1484 = vadd.f32 0.0, %v1483
  %v1485 = vpop.f32.mrf.mxu0
  %v1486 = vadd.f32 0.0, %v1485
  %1487 = vmatmul.bf16.gmra.mxu0 %v1455
  %v1488 = vpop.f32.mrf.mxu0
  %v1489 = vadd.f32 0.0, %v1488
  %v1490 = vpop.f32.mrf.mxu0
  %v1491 = vadd.f32 0.0, %v1490
  %1492 = vmatmul.bf16.gmra.mxu0 %v1456
  %v1493 = vpop.f32.mrf.mxu0
  %v1494 = vadd.f32 0.0, %v1493
  %v1495 = vpop.f32.mrf.mxu0
  %v1496 = vadd.f32 0.0, %v1495
  %1497 = vmatmul.bf16.gmra.mxu0 %v1457
  %v1498 = vpop.f32.mrf.mxu0
  %v1499 = vadd.f32 0.0, %v1498
  %v1500 = vpop.f32.mrf.mxu0
  %v1501 = vadd.f32 0.0, %v1500
  %1502 = vmatmul.bf16.gmra.mxu0 %v1458
  %v1503 = vpop.f32.mrf.mxu0
  %v1504 = vadd.f32 0.0, %v1503
  %v1505 = vpop.f32.mrf.mxu0
  %v1506 = vadd.f32 0.0, %v1505
  %1507 = vmatmul.bf16.gmra.mxu0 %v1459
  %v1508 = vpop.f32.mrf.mxu0
  %v1509 = vadd.f32 0.0, %v1508
  %v1510 = vpop.f32.mrf.mxu0
  %v1511 = vadd.f32 0.0, %v1510
  %1512 = vmatmul.bf16.gmra.mxu0 %v1460
  %v1513 = vpop.f32.mrf.mxu0
  %v1514 = vadd.f32 0.0, %v1513
  %v1515 = vpop.f32.mrf.mxu0
  %v1516 = vadd.f32 0.0, %v1515
  %1517 = vdwg.mxu0
  %v1534 = vunpack.c.l.b16 %v1405
  %v1535 = vunpack.c.l.b16 %v1406
  %v1536 = vunpack.c.l.b16 %v1407
  %v1537 = vunpack.c.l.b16 %v1408
  %v1538 = vunpack.c.l.b16 %v1409
  %v1539 = vunpack.c.l.b16 %v1410
  %v1540 = vunpack.c.l.b16 %v1411
  %v1541 = vunpack.c.l.b16 %v1412
  %v1542 = vunpack.c.l.b16 %v1413
  %v1543 = vunpack.c.l.b16 %v1414
  %v1544 = vunpack.c.l.b16 %v1415
  %v1545 = vunpack.c.l.b16 %v1416
  %v1546 = vunpack.c.l.b16 %v1417
  %v1547 = vunpack.c.l.b16 %v1418
  %v1548 = vunpack.c.l.b16 %v1419
  %v1549 = vunpack.c.l.b16 %v1420
  %v1550 = vpack.c.b16 %v1535, %v1534
  %v1551 = vpack.c.b16 %v1537, %v1536
  %v1552 = vpack.c.b16 %v1539, %v1538
  %v1553 = vpack.c.b16 %v1541, %v1540
  %v1554 = vpack.c.b16 %v1543, %v1542
  %v1555 = vpack.c.b16 %v1545, %v1544
  %v1556 = vpack.c.b16 %v1547, %v1546
  %v1557 = vpack.c.b16 %v1549, %v1548
  %1566 = vmatpush.bf16.xpose.msra.mxu0 %v1557
  %1567 = vmatpush.bf16.xpose.msra.mxu0 %v1556
  %1568 = vmatpush.bf16.xpose.msra.mxu0 %v1555
  %1569 = vmatpush.bf16.xpose.msra.mxu0 %v1554
  %1570 = vmatpush.bf16.xpose.msra.mxu0 %v1553
  %1571 = vmatpush.bf16.xpose.msra.mxu0 %v1552
  %1572 = vmatpush.bf16.xpose.msra.mxu0 %v1551
  %1573 = vmatpush.bf16.xpose.msra.mxu0 %v1550
  %1574 = vmatmul.bf16.gmra.mxu0 %v1550
  %v1575 = vpop.f32.mrf.mxu0
  %v1576 = vadd.f32 0.0, %v1575
  %v1577 = vpop.f32.mrf.mxu0
  %v1578 = vadd.f32 0.0, %v1577
  %1579 = vmatmul.bf16.gmra.mxu0 %v1551
  %v1580 = vpop.f32.mrf.mxu0
  %v1581 = vadd.f32 0.0, %v1580
  %v1582 = vpop.f32.mrf.mxu0
  %v1583 = vadd.f32 0.0, %v1582
  %1584 = vmatmul.bf16.gmra.mxu0 %v1552
  %v1585 = vpop.f32.mrf.mxu0
  %v1586 = vadd.f32 0.0, %v1585
  %v1587 = vpop.f32.mrf.mxu0
  %v1588 = vadd.f32 0.0, %v1587
  %1589 = vmatmul.bf16.gmra.mxu0 %v1553
  %v1590 = vpop.f32.mrf.mxu0
  %v1591 = vadd.f32 0.0, %v1590
  %v1592 = vpop.f32.mrf.mxu0
  %v1593 = vadd.f32 0.0, %v1592
  %1594 = vmatmul.bf16.gmra.mxu0 %v1554
  %v1595 = vpop.f32.mrf.mxu0
  %v1596 = vadd.f32 0.0, %v1595
  %v1597 = vpop.f32.mrf.mxu0
  %v1598 = vadd.f32 0.0, %v1597
  %1599 = vmatmul.bf16.gmra.mxu0 %v1555
  %v1600 = vpop.f32.mrf.mxu0
  %v1601 = vadd.f32 0.0, %v1600
  %v1602 = vpop.f32.mrf.mxu0
  %v1603 = vadd.f32 0.0, %v1602
  %1604 = vmatmul.bf16.gmra.mxu0 %v1556
  %v1605 = vpop.f32.mrf.mxu0
  %v1606 = vadd.f32 0.0, %v1605
  %v1607 = vpop.f32.mrf.mxu0
  %v1608 = vadd.f32 0.0, %v1607
  %1609 = vmatmul.bf16.gmra.mxu0 %v1557
  %v1610 = vpop.f32.mrf.mxu0
  %v1611 = vadd.f32 0.0, %v1610
  %v1612 = vpop.f32.mrf.mxu0
  %v1613 = vadd.f32 0.0, %v1612
  %1614 = vdwg.mxu0
  %v1615 = vxor.u32 %v1479, 2147483648
  %v1616 = vxor.u32 %v1481, 2147483648
  %v1617 = vxor.u32 %v1484, 2147483648
  %v1618 = vxor.u32 %v1486, 2147483648
  %v1619 = vxor.u32 %v1489, 2147483648
  %v1620 = vxor.u32 %v1491, 2147483648
  %v1621 = vxor.u32 %v1494, 2147483648
  %v1622 = vxor.u32 %v1496, 2147483648
  %v1623 = vxor.u32 %v1499, 2147483648
  %v1624 = vxor.u32 %v1501, 2147483648
  %v1625 = vxor.u32 %v1504, 2147483648
  %v1626 = vxor.u32 %v1506, 2147483648
  %v1627 = vxor.u32 %v1509, 2147483648
  %v1628 = vxor.u32 %v1511, 2147483648
  %v1629 = vxor.u32 %v1514, 2147483648
  %v1630 = vxor.u32 %v1516, 2147483648
  %v1631 = vxor.u32 %v1576, 2147483648
  %v1632 = vxor.u32 %v1578, 2147483648
  %v1633 = vxor.u32 %v1581, 2147483648
  %v1634 = vxor.u32 %v1583, 2147483648
  %v1635 = vxor.u32 %v1586, 2147483648
  %v1636 = vxor.u32 %v1588, 2147483648
  %v1637 = vxor.u32 %v1591, 2147483648
  %v1638 = vxor.u32 %v1593, 2147483648
  %v1639 = vxor.u32 %v1596, 2147483648
  %v1640 = vxor.u32 %v1598, 2147483648
  %v1641 = vxor.u32 %v1601, 2147483648
  %v1642 = vxor.u32 %v1603, 2147483648
  %v1643 = vxor.u32 %v1606, 2147483648
  %v1644 = vxor.u32 %v1608, 2147483648
  %v1645 = vxor.u32 %v1611, 2147483648
  %v1646 = vxor.u32 %v1613, 2147483648
  %v1647 = vmul.f32 %v1615, 1.442695
  %v1648 = vpow.pop %v1647
  %v1649 = vmul.f32 %v1616, 1.442695
  %v1650 = vpow.pop %v1649
  %v1651 = vmul.f32 %v1617, 1.442695
  %v1652 = vpow.pop %v1651
  %v1653 = vmul.f32 %v1618, 1.442695
  %v1654 = vpow.pop %v1653
  %v1655 = vmul.f32 %v1619, 1.442695
  %v1656 = vpow.pop %v1655
  %v1657 = vmul.f32 %v1620, 1.442695
  %v1658 = vpow.pop %v1657
  %v1659 = vmul.f32 %v1621, 1.442695
  %v1660 = vpow.pop %v1659
  %v1661 = vmul.f32 %v1622, 1.442695
  %v1662 = vpow.pop %v1661
  %v1663 = vmul.f32 %v1623, 1.442695
  %v1664 = vpow.pop %v1663
  %v1665 = vmul.f32 %v1624, 1.442695
  %v1666 = vpow.pop %v1665
  %v1667 = vmul.f32 %v1625, 1.442695
  %v1668 = vpow.pop %v1667
  %v1669 = vmul.f32 %v1626, 1.442695
  %v1670 = vpow.pop %v1669
  %v1671 = vmul.f32 %v1627, 1.442695
  %v1672 = vpow.pop %v1671
  %v1673 = vmul.f32 %v1628, 1.442695
  %v1674 = vpow.pop %v1673
  %v1675 = vmul.f32 %v1629, 1.442695
  %v1676 = vpow.pop %v1675
  %v1677 = vmul.f32 %v1630, 1.442695
  %v1678 = vpow.pop %v1677
  %v1679 = vmul.f32 %v1631, 1.442695
  %v1680 = vpow.pop %v1679
  %v1681 = vmul.f32 %v1632, 1.442695
  %v1682 = vpow.pop %v1681
  %v1683 = vmul.f32 %v1633, 1.442695
  %v1684 = vpow.pop %v1683
  %v1685 = vmul.f32 %v1634, 1.442695
  %v1686 = vpow.pop %v1685
  %v1687 = vmul.f32 %v1635, 1.442695
  %v1688 = vpow.pop %v1687
  %v1689 = vmul.f32 %v1636, 1.442695
  %v1690 = vpow.pop %v1689
  %v1691 = vmul.f32 %v1637, 1.442695
  %v1692 = vpow.pop %v1691
  %v1693 = vmul.f32 %v1638, 1.442695
  %v1694 = vpow.pop %v1693
  %v1695 = vmul.f32 %v1639, 1.442695
  %v1696 = vpow.pop %v1695
  %v1697 = vmul.f32 %v1640, 1.442695
  %v1698 = vpow.pop %v1697
  %v1699 = vmul.f32 %v1641, 1.442695
  %v1700 = vpow.pop %v1699
  %v1701 = vmul.f32 %v1642, 1.442695
  %v1702 = vpow.pop %v1701
  %v1703 = vmul.f32 %v1643, 1.442695
  %v1704 = vpow.pop %v1703
  %v1705 = vmul.f32 %v1644, 1.442695
  %v1706 = vpow.pop %v1705
  %v1707 = vmul.f32 %v1645, 1.442695
  %v1708 = vpow.pop %v1707
  %v1709 = vmul.f32 %v1646, 1.442695
  %v1710 = vpow.pop %v1709
  %v1711 = vadd.f32 %v1648, 1.0
  %v1712 = vadd.f32 %v1650, 1.0
  %v1713 = vadd.f32 %v1652, 1.0
  %v1714 = vadd.f32 %v1654, 1.0
  %v1715 = vadd.f32 %v1656, 1.0
  %v1716 = vadd.f32 %v1658, 1.0
  %v1717 = vadd.f32 %v1660, 1.0
  %v1718 = vadd.f32 %v1662, 1.0
  %v1719 = vadd.f32 %v1664, 1.0
  %v1720 = vadd.f32 %v1666, 1.0
  %v1721 = vadd.f32 %v1668, 1.0
  %v1722 = vadd.f32 %v1670, 1.0
  %v1723 = vadd.f32 %v1672, 1.0
  %v1724 = vadd.f32 %v1674, 1.0
  %v1725 = vadd.f32 %v1676, 1.0
  %v1726 = vadd.f32 %v1678, 1.0
  %v1727 = vadd.f32 %v1680, 1.0
  %v1728 = vadd.f32 %v1682, 1.0
  %v1729 = vadd.f32 %v1684, 1.0
  %v1730 = vadd.f32 %v1686, 1.0
  %v1731 = vadd.f32 %v1688, 1.0
  %v1732 = vadd.f32 %v1690, 1.0
  %v1733 = vadd.f32 %v1692, 1.0
  %v1734 = vadd.f32 %v1694, 1.0
  %v1735 = vadd.f32 %v1696, 1.0
  %v1736 = vadd.f32 %v1698, 1.0
  %v1737 = vadd.f32 %v1700, 1.0
  %v1738 = vadd.f32 %v1702, 1.0
  %v1739 = vadd.f32 %v1704, 1.0
  %v1740 = vadd.f32 %v1706, 1.0
  %v1741 = vadd.f32 %v1708, 1.0
  %v1742 = vadd.f32 %v1710, 1.0
  %v1743 = vrcp.pop %v1711
  %v1744 = vmul.f32 %v1711, %v1743
  %v1745 = vsub.f32 1.0, %v1744
  %v1746 = vmul.f32 %v1743, %v1745
  %v1747 = vadd.f32 %v1743, %v1746
  %vm1748 = vweird.f32 %v1711
  %vm1749 = vweird.f32 %v1743
  %vm1750 = vmor %vm1748, %vm1749
  %v1751 = vsel %vm1750, %v1743, %v1747
  %v1752 = vand.u32 2147483647, %v1711
  %vm1753 = vcmp.eq.f32.partialorder %v1752, 8.507059e+37
  %v1754 = vand.u32 %v1711, 2147483648
  %v1755 = vor.u32 1.1754944e-38, %v1754
  %v1756 = vsel %vm1753, %v1755, %v1751
  %v1757 = vmul.f32 1.0, %v1756
  %v1758 = vrcp.pop %v1712
  %v1759 = vmul.f32 %v1712, %v1758
  %v1760 = vsub.f32 1.0, %v1759
  %v1761 = vmul.f32 %v1758, %v1760
  %v1762 = vadd.f32 %v1758, %v1761
  %vm1763 = vweird.f32 %v1712
  %vm1764 = vweird.f32 %v1758
  %vm1765 = vmor %vm1763, %vm1764
  %v1766 = vsel %vm1765, %v1758, %v1762
  %v1767 = vand.u32 2147483647, %v1712
  %vm1768 = vcmp.eq.f32.partialorder %v1767, 8.507059e+37
  %v1769 = vand.u32 %v1712, 2147483648
  %v1770 = vor.u32 1.1754944e-38, %v1769
  %v1771 = vsel %vm1768, %v1770, %v1766
  %v1772 = vmul.f32 1.0, %v1771
  %v1773 = vrcp.pop %v1713
  %v1774 = vmul.f32 %v1713, %v1773
  %v1775 = vsub.f32 1.0, %v1774
  %v1776 = vmul.f32 %v1773, %v1775
  %v1777 = vadd.f32 %v1773, %v1776
  %vm1778 = vweird.f32 %v1713
  %vm1779 = vweird.f32 %v1773
  %vm1780 = vmor %vm1778, %vm1779
  %v1781 = vsel %vm1780, %v1773, %v1777
  %v1782 = vand.u32 2147483647, %v1713
  %vm1783 = vcmp.eq.f32.partialorder %v1782, 8.507059e+37
  %v1784 = vand.u32 %v1713, 2147483648
  %v1785 = vor.u32 1.1754944e-38, %v1784
  %v1786 = vsel %vm1783, %v1785, %v1781
  %v1787 = vmul.f32 1.0, %v1786
  %v1788 = vrcp.pop %v1714
  %v1789 = vmul.f32 %v1714, %v1788
  %v1790 = vsub.f32 1.0, %v1789
  %v1791 = vmul.f32 %v1788, %v1790
  %v1792 = vadd.f32 %v1788, %v1791
  %vm1793 = vweird.f32 %v1714
  %vm1794 = vweird.f32 %v1788
  %vm1795 = vmor %vm1793, %vm1794
  %v1796 = vsel %vm1795, %v1788, %v1792
  %v1797 = vand.u32 2147483647, %v1714
  %vm1798 = vcmp.eq.f32.partialorder %v1797, 8.507059e+37
  %v1799 = vand.u32 %v1714, 2147483648
  %v1800 = vor.u32 1.1754944e-38, %v1799
  %v1801 = vsel %vm1798, %v1800, %v1796
  %v1802 = vmul.f32 1.0, %v1801
  %v1803 = vrcp.pop %v1715
  %v1804 = vmul.f32 %v1715, %v1803
  %v1805 = vsub.f32 1.0, %v1804
  %v1806 = vmul.f32 %v1803, %v1805
  %v1807 = vadd.f32 %v1803, %v1806
  %vm1808 = vweird.f32 %v1715
  %vm1809 = vweird.f32 %v1803
  %vm1810 = vmor %vm1808, %vm1809
  %v1811 = vsel %vm1810, %v1803, %v1807
  %v1812 = vand.u32 2147483647, %v1715
  %vm1813 = vcmp.eq.f32.partialorder %v1812, 8.507059e+37
  %v1814 = vand.u32 %v1715, 2147483648
  %v1815 = vor.u32 1.1754944e-38, %v1814
  %v1816 = vsel %vm1813, %v1815, %v1811
  %v1817 = vmul.f32 1.0, %v1816
  %v1818 = vrcp.pop %v1716
  %v1819 = vmul.f32 %v1716, %v1818
  %v1820 = vsub.f32 1.0, %v1819
  %v1821 = vmul.f32 %v1818, %v1820
  %v1822 = vadd.f32 %v1818, %v1821
  %vm1823 = vweird.f32 %v1716
  %vm1824 = vweird.f32 %v1818
  %vm1825 = vmor %vm1823, %vm1824
  %v1826 = vsel %vm1825, %v1818, %v1822
  %v1827 = vand.u32 2147483647, %v1716
  %vm1828 = vcmp.eq.f32.partialorder %v1827, 8.507059e+37
  %v1829 = vand.u32 %v1716, 2147483648
  %v1830 = vor.u32 1.1754944e-38, %v1829
  %v1831 = vsel %vm1828, %v1830, %v1826
  %v1832 = vmul.f32 1.0, %v1831
  %v1833 = vrcp.pop %v1717
  %v1834 = vmul.f32 %v1717, %v1833
  %v1835 = vsub.f32 1.0, %v1834
  %v1836 = vmul.f32 %v1833, %v1835
  %v1837 = vadd.f32 %v1833, %v1836
  %vm1838 = vweird.f32 %v1717
  %vm1839 = vweird.f32 %v1833
  %vm1840 = vmor %vm1838, %vm1839
  %v1841 = vsel %vm1840, %v1833, %v1837
  %v1842 = vand.u32 2147483647, %v1717
  %vm1843 = vcmp.eq.f32.partialorder %v1842, 8.507059e+37
  %v1844 = vand.u32 %v1717, 2147483648
  %v1845 = vor.u32 1.1754944e-38, %v1844
  %v1846 = vsel %vm1843, %v1845, %v1841
  %v1847 = vmul.f32 1.0, %v1846
  %v1848 = vrcp.pop %v1718
  %v1849 = vmul.f32 %v1718, %v1848
  %v1850 = vsub.f32 1.0, %v1849
  %v1851 = vmul.f32 %v1848, %v1850
  %v1852 = vadd.f32 %v1848, %v1851
  %vm1853 = vweird.f32 %v1718
  %vm1854 = vweird.f32 %v1848
  %vm1855 = vmor %vm1853, %vm1854
  %v1856 = vsel %vm1855, %v1848, %v1852
  %v1857 = vand.u32 2147483647, %v1718
  %vm1858 = vcmp.eq.f32.partialorder %v1857, 8.507059e+37
  %v1859 = vand.u32 %v1718, 2147483648
  %v1860 = vor.u32 1.1754944e-38, %v1859
  %v1861 = vsel %vm1858, %v1860, %v1856
  %v1862 = vmul.f32 1.0, %v1861
  %v1863 = vrcp.pop %v1719
  %v1864 = vmul.f32 %v1719, %v1863
  %v1865 = vsub.f32 1.0, %v1864
  %v1866 = vmul.f32 %v1863, %v1865
  %v1867 = vadd.f32 %v1863, %v1866
  %vm1868 = vweird.f32 %v1719
  %vm1869 = vweird.f32 %v1863
  %vm1870 = vmor %vm1868, %vm1869
  %v1871 = vsel %vm1870, %v1863, %v1867
  %v1872 = vand.u32 2147483647, %v1719
  %vm1873 = vcmp.eq.f32.partialorder %v1872, 8.507059e+37
  %v1874 = vand.u32 %v1719, 2147483648
  %v1875 = vor.u32 1.1754944e-38, %v1874
  %v1876 = vsel %vm1873, %v1875, %v1871
  %v1877 = vmul.f32 1.0, %v1876
  %v1878 = vrcp.pop %v1720
  %v1879 = vmul.f32 %v1720, %v1878
  %v1880 = vsub.f32 1.0, %v1879
  %v1881 = vmul.f32 %v1878, %v1880
  %v1882 = vadd.f32 %v1878, %v1881
  %vm1883 = vweird.f32 %v1720
  %vm1884 = vweird.f32 %v1878
  %vm1885 = vmor %vm1883, %vm1884
  %v1886 = vsel %vm1885, %v1878, %v1882
  %v1887 = vand.u32 2147483647, %v1720
  %vm1888 = vcmp.eq.f32.partialorder %v1887, 8.507059e+37
  %v1889 = vand.u32 %v1720, 2147483648
  %v1890 = vor.u32 1.1754944e-38, %v1889
  %v1891 = vsel %vm1888, %v1890, %v1886
  %v1892 = vmul.f32 1.0, %v1891
  %v1893 = vrcp.pop %v1721
  %v1894 = vmul.f32 %v1721, %v1893
  %v1895 = vsub.f32 1.0, %v1894
  %v1896 = vmul.f32 %v1893, %v1895
  %v1897 = vadd.f32 %v1893, %v1896
  %vm1898 = vweird.f32 %v1721
  %vm1899 = vweird.f32 %v1893
  %vm1900 = vmor %vm1898, %vm1899
  %v1901 = vsel %vm1900, %v1893, %v1897
  %v1902 = vand.u32 2147483647, %v1721
  %vm1903 = vcmp.eq.f32.partialorder %v1902, 8.507059e+37
  %v1904 = vand.u32 %v1721, 2147483648
  %v1905 = vor.u32 1.1754944e-38, %v1904
  %v1906 = vsel %vm1903, %v1905, %v1901
  %v1907 = vmul.f32 1.0, %v1906
  %v1908 = vrcp.pop %v1722
  %v1909 = vmul.f32 %v1722, %v1908
  %v1910 = vsub.f32 1.0, %v1909
  %v1911 = vmul.f32 %v1908, %v1910
  %v1912 = vadd.f32 %v1908, %v1911
  %vm1913 = vweird.f32 %v1722
  %vm1914 = vweird.f32 %v1908
  %vm1915 = vmor %vm1913, %vm1914
  %v1916 = vsel %vm1915, %v1908, %v1912
  %v1917 = vand.u32 2147483647, %v1722
  %vm1918 = vcmp.eq.f32.partialorder %v1917, 8.507059e+37
  %v1919 = vand.u32 %v1722, 2147483648
  %v1920 = vor.u32 1.1754944e-38, %v1919
  %v1921 = vsel %vm1918, %v1920, %v1916
  %v1922 = vmul.f32 1.0, %v1921
  %v1923 = vrcp.pop %v1723
  %v1924 = vmul.f32 %v1723, %v1923
  %v1925 = vsub.f32 1.0, %v1924
  %v1926 = vmul.f32 %v1923, %v1925
  %v1927 = vadd.f32 %v1923, %v1926
  %vm1928 = vweird.f32 %v1723
  %vm1929 = vweird.f32 %v1923
  %vm1930 = vmor %vm1928, %vm1929
  %v1931 = vsel %vm1930, %v1923, %v1927
  %v1932 = vand.u32 2147483647, %v1723
  %vm1933 = vcmp.eq.f32.partialorder %v1932, 8.507059e+37
  %v1934 = vand.u32 %v1723, 2147483648
  %v1935 = vor.u32 1.1754944e-38, %v1934
  %v1936 = vsel %vm1933, %v1935, %v1931
  %v1937 = vmul.f32 1.0, %v1936
  %v1938 = vrcp.pop %v1724
  %v1939 = vmul.f32 %v1724, %v1938
  %v1940 = vsub.f32 1.0, %v1939
  %v1941 = vmul.f32 %v1938, %v1940
  %v1942 = vadd.f32 %v1938, %v1941
  %vm1943 = vweird.f32 %v1724
  %vm1944 = vweird.f32 %v1938
  %vm1945 = vmor %vm1943, %vm1944
  %v1946 = vsel %vm1945, %v1938, %v1942
  %v1947 = vand.u32 2147483647, %v1724
  %vm1948 = vcmp.eq.f32.partialorder %v1947, 8.507059e+37
  %v1949 = vand.u32 %v1724, 2147483648
  %v1950 = vor.u32 1.1754944e-38, %v1949
  %v1951 = vsel %vm1948, %v1950, %v1946
  %v1952 = vmul.f32 1.0, %v1951
  %v1953 = vrcp.pop %v1725
  %v1954 = vmul.f32 %v1725, %v1953
  %v1955 = vsub.f32 1.0, %v1954
  %v1956 = vmul.f32 %v1953, %v1955
  %v1957 = vadd.f32 %v1953, %v1956
  %vm1958 = vweird.f32 %v1725
  %vm1959 = vweird.f32 %v1953
  %vm1960 = vmor %vm1958, %vm1959
  %v1961 = vsel %vm1960, %v1953, %v1957
  %v1962 = vand.u32 2147483647, %v1725
  %vm1963 = vcmp.eq.f32.partialorder %v1962, 8.507059e+37
  %v1964 = vand.u32 %v1725, 2147483648
  %v1965 = vor.u32 1.1754944e-38, %v1964
  %v1966 = vsel %vm1963, %v1965, %v1961
  %v1967 = vmul.f32 1.0, %v1966
  %v1968 = vrcp.pop %v1726
  %v1969 = vmul.f32 %v1726, %v1968
  %v1970 = vsub.f32 1.0, %v1969
  %v1971 = vmul.f32 %v1968, %v1970
  %v1972 = vadd.f32 %v1968, %v1971
  %vm1973 = vweird.f32 %v1726
  %vm1974 = vweird.f32 %v1968
  %vm1975 = vmor %vm1973, %vm1974
  %v1976 = vsel %vm1975, %v1968, %v1972
  %v1977 = vand.u32 2147483647, %v1726
  %vm1978 = vcmp.eq.f32.partialorder %v1977, 8.507059e+37
  %v1979 = vand.u32 %v1726, 2147483648
  %v1980 = vor.u32 1.1754944e-38, %v1979
  %v1981 = vsel %vm1978, %v1980, %v1976
  %v1982 = vmul.f32 1.0, %v1981
  %v1983 = vrcp.pop %v1727
  %v1984 = vmul.f32 %v1727, %v1983
  %v1985 = vsub.f32 1.0, %v1984
  %v1986 = vmul.f32 %v1983, %v1985
  %v1987 = vadd.f32 %v1983, %v1986
  %vm1988 = vweird.f32 %v1727
  %vm1989 = vweird.f32 %v1983
  %vm1990 = vmor %vm1988, %vm1989
  %v1991 = vsel %vm1990, %v1983, %v1987
  %v1992 = vand.u32 2147483647, %v1727
  %vm1993 = vcmp.eq.f32.partialorder %v1992, 8.507059e+37
  %v1994 = vand.u32 %v1727, 2147483648
  %v1995 = vor.u32 1.1754944e-38, %v1994
  %v1996 = vsel %vm1993, %v1995, %v1991
  %v1997 = vmul.f32 1.0, %v1996
  %v1998 = vrcp.pop %v1728
  %v1999 = vmul.f32 %v1728, %v1998
  %v2000 = vsub.f32 1.0, %v1999
  %v2001 = vmul.f32 %v1998, %v2000
  %v2002 = vadd.f32 %v1998, %v2001
  %vm2003 = vweird.f32 %v1728
  %vm2004 = vweird.f32 %v1998
  %vm2005 = vmor %vm2003, %vm2004
  %v2006 = vsel %vm2005, %v1998, %v2002
  %v2007 = vand.u32 2147483647, %v1728
  %vm2008 = vcmp.eq.f32.partialorder %v2007, 8.507059e+37
  %v2009 = vand.u32 %v1728, 2147483648
  %v2010 = vor.u32 1.1754944e-38, %v2009
  %v2011 = vsel %vm2008, %v2010, %v2006
  %v2012 = vmul.f32 1.0, %v2011
  %v2013 = vrcp.pop %v1729
  %v2014 = vmul.f32 %v1729, %v2013
  %v2015 = vsub.f32 1.0, %v2014
  %v2016 = vmul.f32 %v2013, %v2015
  %v2017 = vadd.f32 %v2013, %v2016
  %vm2018 = vweird.f32 %v1729
  %vm2019 = vweird.f32 %v2013
  %vm2020 = vmor %vm2018, %vm2019
  %v2021 = vsel %vm2020, %v2013, %v2017
  %v2022 = vand.u32 2147483647, %v1729
  %vm2023 = vcmp.eq.f32.partialorder %v2022, 8.507059e+37
  %v2024 = vand.u32 %v1729, 2147483648
  %v2025 = vor.u32 1.1754944e-38, %v2024
  %v2026 = vsel %vm2023, %v2025, %v2021
  %v2027 = vmul.f32 1.0, %v2026
  %v2028 = vrcp.pop %v1730
  %v2029 = vmul.f32 %v1730, %v2028
  %v2030 = vsub.f32 1.0, %v2029
  %v2031 = vmul.f32 %v2028, %v2030
  %v2032 = vadd.f32 %v2028, %v2031
  %vm2033 = vweird.f32 %v1730
  %vm2034 = vweird.f32 %v2028
  %vm2035 = vmor %vm2033, %vm2034
  %v2036 = vsel %vm2035, %v2028, %v2032
  %v2037 = vand.u32 2147483647, %v1730
  %vm2038 = vcmp.eq.f32.partialorder %v2037, 8.507059e+37
  %v2039 = vand.u32 %v1730, 2147483648
  %v2040 = vor.u32 1.1754944e-38, %v2039
  %v2041 = vsel %vm2038, %v2040, %v2036
  %v2042 = vmul.f32 1.0, %v2041
  %v2043 = vrcp.pop %v1731
  %v2044 = vmul.f32 %v1731, %v2043
  %v2045 = vsub.f32 1.0, %v2044
  %v2046 = vmul.f32 %v2043, %v2045
  %v2047 = vadd.f32 %v2043, %v2046
  %vm2048 = vweird.f32 %v1731
  %vm2049 = vweird.f32 %v2043
  %vm2050 = vmor %vm2048, %vm2049
  %v2051 = vsel %vm2050, %v2043, %v2047
  %v2052 = vand.u32 2147483647, %v1731
  %vm2053 = vcmp.eq.f32.partialorder %v2052, 8.507059e+37
  %v2054 = vand.u32 %v1731, 2147483648
  %v2055 = vor.u32 1.1754944e-38, %v2054
  %v2056 = vsel %vm2053, %v2055, %v2051
  %v2057 = vmul.f32 1.0, %v2056
  %v2058 = vrcp.pop %v1732
  %v2059 = vmul.f32 %v1732, %v2058
  %v2060 = vsub.f32 1.0, %v2059
  %v2061 = vmul.f32 %v2058, %v2060
  %v2062 = vadd.f32 %v2058, %v2061
  %vm2063 = vweird.f32 %v1732
  %vm2064 = vweird.f32 %v2058
  %vm2065 = vmor %vm2063, %vm2064
  %v2066 = vsel %vm2065, %v2058, %v2062
  %v2067 = vand.u32 2147483647, %v1732
  %vm2068 = vcmp.eq.f32.partialorder %v2067, 8.507059e+37
  %v2069 = vand.u32 %v1732, 2147483648
  %v2070 = vor.u32 1.1754944e-38, %v2069
  %v2071 = vsel %vm2068, %v2070, %v2066
  %v2072 = vmul.f32 1.0, %v2071
  %v2073 = vrcp.pop %v1733
  %v2074 = vmul.f32 %v1733, %v2073
  %v2075 = vsub.f32 1.0, %v2074
  %v2076 = vmul.f32 %v2073, %v2075
  %v2077 = vadd.f32 %v2073, %v2076
  %vm2078 = vweird.f32 %v1733
  %vm2079 = vweird.f32 %v2073
  %vm2080 = vmor %vm2078, %vm2079
  %v2081 = vsel %vm2080, %v2073, %v2077
  %v2082 = vand.u32 2147483647, %v1733
  %vm2083 = vcmp.eq.f32.partialorder %v2082, 8.507059e+37
  %v2084 = vand.u32 %v1733, 2147483648
  %v2085 = vor.u32 1.1754944e-38, %v2084
  %v2086 = vsel %vm2083, %v2085, %v2081
  %v2087 = vmul.f32 1.0, %v2086
  %v2088 = vrcp.pop %v1734
  %v2089 = vmul.f32 %v1734, %v2088
  %v2090 = vsub.f32 1.0, %v2089
  %v2091 = vmul.f32 %v2088, %v2090
  %v2092 = vadd.f32 %v2088, %v2091
  %vm2093 = vweird.f32 %v1734
  %vm2094 = vweird.f32 %v2088
  %vm2095 = vmor %vm2093, %vm2094
  %v2096 = vsel %vm2095, %v2088, %v2092
  %v2097 = vand.u32 2147483647, %v1734
  %vm2098 = vcmp.eq.f32.partialorder %v2097, 8.507059e+37
  %v2099 = vand.u32 %v1734, 2147483648
  %v2100 = vor.u32 1.1754944e-38, %v2099
  %v2101 = vsel %vm2098, %v2100, %v2096
  %v2102 = vmul.f32 1.0, %v2101
  %v2103 = vrcp.pop %v1735
  %v2104 = vmul.f32 %v1735, %v2103
  %v2105 = vsub.f32 1.0, %v2104
  %v2106 = vmul.f32 %v2103, %v2105
  %v2107 = vadd.f32 %v2103, %v2106
  %vm2108 = vweird.f32 %v1735
  %vm2109 = vweird.f32 %v2103
  %vm2110 = vmor %vm2108, %vm2109
  %v2111 = vsel %vm2110, %v2103, %v2107
  %v2112 = vand.u32 2147483647, %v1735
  %vm2113 = vcmp.eq.f32.partialorder %v2112, 8.507059e+37
  %v2114 = vand.u32 %v1735, 2147483648
  %v2115 = vor.u32 1.1754944e-38, %v2114
  %v2116 = vsel %vm2113, %v2115, %v2111
  %v2117 = vmul.f32 1.0, %v2116
  %v2118 = vrcp.pop %v1736
  %v2119 = vmul.f32 %v1736, %v2118
  %v2120 = vsub.f32 1.0, %v2119
  %v2121 = vmul.f32 %v2118, %v2120
  %v2122 = vadd.f32 %v2118, %v2121
  %vm2123 = vweird.f32 %v1736
  %vm2124 = vweird.f32 %v2118
  %vm2125 = vmor %vm2123, %vm2124
  %v2126 = vsel %vm2125, %v2118, %v2122
  %v2127 = vand.u32 2147483647, %v1736
  %vm2128 = vcmp.eq.f32.partialorder %v2127, 8.507059e+37
  %v2129 = vand.u32 %v1736, 2147483648
  %v2130 = vor.u32 1.1754944e-38, %v2129
  %v2131 = vsel %vm2128, %v2130, %v2126
  %v2132 = vmul.f32 1.0, %v2131
  %v2133 = vrcp.pop %v1737
  %v2134 = vmul.f32 %v1737, %v2133
  %v2135 = vsub.f32 1.0, %v2134
  %v2136 = vmul.f32 %v2133, %v2135
  %v2137 = vadd.f32 %v2133, %v2136
  %vm2138 = vweird.f32 %v1737
  %vm2139 = vweird.f32 %v2133
  %vm2140 = vmor %vm2138, %vm2139
  %v2141 = vsel %vm2140, %v2133, %v2137
  %v2142 = vand.u32 2147483647, %v1737
  %vm2143 = vcmp.eq.f32.partialorder %v2142, 8.507059e+37
  %v2144 = vand.u32 %v1737, 2147483648
  %v2145 = vor.u32 1.1754944e-38, %v2144
  %v2146 = vsel %vm2143, %v2145, %v2141
  %v2147 = vmul.f32 1.0, %v2146
  %v2148 = vrcp.pop %v1738
  %v2149 = vmul.f32 %v1738, %v2148
  %v2150 = vsub.f32 1.0, %v2149
  %v2151 = vmul.f32 %v2148, %v2150
  %v2152 = vadd.f32 %v2148, %v2151
  %vm2153 = vweird.f32 %v1738
  %vm2154 = vweird.f32 %v2148
  %vm2155 = vmor %vm2153, %vm2154
  %v2156 = vsel %vm2155, %v2148, %v2152
  %v2157 = vand.u32 2147483647, %v1738
  %vm2158 = vcmp.eq.f32.partialorder %v2157, 8.507059e+37
  %v2159 = vand.u32 %v1738, 2147483648
  %v2160 = vor.u32 1.1754944e-38, %v2159
  %v2161 = vsel %vm2158, %v2160, %v2156
  %v2162 = vmul.f32 1.0, %v2161
  %v2163 = vrcp.pop %v1739
  %v2164 = vmul.f32 %v1739, %v2163
  %v2165 = vsub.f32 1.0, %v2164
  %v2166 = vmul.f32 %v2163, %v2165
  %v2167 = vadd.f32 %v2163, %v2166
  %vm2168 = vweird.f32 %v1739
  %vm2169 = vweird.f32 %v2163
  %vm2170 = vmor %vm2168, %vm2169
  %v2171 = vsel %vm2170, %v2163, %v2167
  %v2172 = vand.u32 2147483647, %v1739
  %vm2173 = vcmp.eq.f32.partialorder %v2172, 8.507059e+37
  %v2174 = vand.u32 %v1739, 2147483648
  %v2175 = vor.u32 1.1754944e-38, %v2174
  %v2176 = vsel %vm2173, %v2175, %v2171
  %v2177 = vmul.f32 1.0, %v2176
  %v2178 = vrcp.pop %v1740
  %v2179 = vmul.f32 %v1740, %v2178
  %v2180 = vsub.f32 1.0, %v2179
  %v2181 = vmul.f32 %v2178, %v2180
  %v2182 = vadd.f32 %v2178, %v2181
  %vm2183 = vweird.f32 %v1740
  %vm2184 = vweird.f32 %v2178
  %vm2185 = vmor %vm2183, %vm2184
  %v2186 = vsel %vm2185, %v2178, %v2182
  %v2187 = vand.u32 2147483647, %v1740
  %vm2188 = vcmp.eq.f32.partialorder %v2187, 8.507059e+37
  %v2189 = vand.u32 %v1740, 2147483648
  %v2190 = vor.u32 1.1754944e-38, %v2189
  %v2191 = vsel %vm2188, %v2190, %v2186
  %v2192 = vmul.f32 1.0, %v2191
  %v2193 = vrcp.pop %v1741
  %v2194 = vmul.f32 %v1741, %v2193
  %v2195 = vsub.f32 1.0, %v2194
  %v2196 = vmul.f32 %v2193, %v2195
  %v2197 = vadd.f32 %v2193, %v2196
  %vm2198 = vweird.f32 %v1741
  %vm2199 = vweird.f32 %v2193
  %vm2200 = vmor %vm2198, %vm2199
  %v2201 = vsel %vm2200, %v2193, %v2197
  %v2202 = vand.u32 2147483647, %v1741
  %vm2203 = vcmp.eq.f32.partialorder %v2202, 8.507059e+37
  %v2204 = vand.u32 %v1741, 2147483648
  %v2205 = vor.u32 1.1754944e-38, %v2204
  %v2206 = vsel %vm2203, %v2205, %v2201
  %v2207 = vmul.f32 1.0, %v2206
  %v2208 = vrcp.pop %v1742
  %v2209 = vmul.f32 %v1742, %v2208
  %v2210 = vsub.f32 1.0, %v2209
  %v2211 = vmul.f32 %v2208, %v2210
  %v2212 = vadd.f32 %v2208, %v2211
  %vm2213 = vweird.f32 %v1742
  %vm2214 = vweird.f32 %v2208
  %vm2215 = vmor %vm2213, %vm2214
  %v2216 = vsel %vm2215, %v2208, %v2212
  %v2217 = vand.u32 2147483647, %v1742
  %vm2218 = vcmp.eq.f32.partialorder %v2217, 8.507059e+37
  %v2219 = vand.u32 %v1742, 2147483648
  %v2220 = vor.u32 1.1754944e-38, %v2219
  %v2221 = vsel %vm2218, %v2220, %v2216
  %v2222 = vmul.f32 1.0, %v2221
  %2223 = vst [vmem:[%s5] sm:$0xff] %v1757
  %2224 = vst [vmem:[%s5 + $0x8] sm:$0xff] %v1772
  %2225 = vst [vmem:[%s5 + $0x10] sm:$0xff] %v1787
  %2226 = vst [vmem:[%s5 + $0x18] sm:$0xff] %v1802
  %2227 = vst [vmem:[%s5 + $0x20] sm:$0xff] %v1817
  %2228 = vst [vmem:[%s5 + $0x28] sm:$0xff] %v1832
  %2229 = vst [vmem:[%s5 + $0x30] sm:$0xff] %v1847
  %2230 = vst [vmem:[%s5 + $0x38] sm:$0xff] %v1862
  %2231 = vst [vmem:[%s5 + $0x40] sm:$0xff] %v1877
  %2232 = vst [vmem:[%s5 + $0x48] sm:$0xff] %v1892
  %2233 = vst [vmem:[%s5 + $0x50] sm:$0xff] %v1907
  %2234 = vst [vmem:[%s5 + $0x58] sm:$0xff] %v1922
  %2235 = vst [vmem:[%s5 + $0x60] sm:$0xff] %v1937
  %2236 = vst [vmem:[%s5 + $0x68] sm:$0xff] %v1952
  %2237 = vst [vmem:[%s5 + $0x70] sm:$0xff] %v1967
  %2238 = vst [vmem:[%s5 + $0x78] sm:$0xff] %v1982
  %2239 = vst [vmem:[%s5 + $0x80] sm:$0xff] %v1997
  %2240 = vst [vmem:[%s5 + $0x88] sm:$0xff] %v2012
  %2241 = vst [vmem:[%s5 + $0x90] sm:$0xff] %v2027
  %2242 = vst [vmem:[%s5 + $0x98] sm:$0xff] %v2042
  %2243 = vst [vmem:[%s5 + $0xa0] sm:$0xff] %v2057
  %2244 = vst [vmem:[%s5 + $0xa8] sm:$0xff] %v2072
  %2245 = vst [vmem:[%s5 + $0xb0] sm:$0xff] %v2087
  %2246 = vst [vmem:[%s5 + $0xb8] sm:$0xff] %v2102
  %2247 = vst [vmem:[%s5 + $0xc0] sm:$0xff] %v2117
  %2248 = vst [vmem:[%s5 + $0xc8] sm:$0xff] %v2132
  %2249 = vst [vmem:[%s5 + $0xd0] sm:$0xff] %v2147
  %2250 = vst [vmem:[%s5 + $0xd8] sm:$0xff] %v2162
  %2251 = vst [vmem:[%s5 + $0xe0] sm:$0xff] %v2177
  %2252 = vst [vmem:[%s5 + $0xe8] sm:$0xff] %v2192
  %2253 = vst [vmem:[%s5 + $0xf0] sm:$0xff] %v2207
  %2254 = vst [vmem:[%s5 + $0xf8] sm:$0xff] %v2222
  // Predicated region
  $region22: #{vgae_forward.1} parent=0 // pred_check
    _
  $region23: #{vgae_forward.1} parent=0 // pred_check_branch
    %2256 = sbr.rel (0) target = $region25
  $region24: #{vgae_forward.1} parent=0 // pred_region
    _
  $region25: #{vgae_forward.1} parent=0 // pred_fallthru
    _
  // Predicated region
  $region26: #{vgae_forward.1} parent=0 // pred_check
    _
  $region27: #{vgae_forward.1} parent=0 // pred_check_branch
    %2258 = sbr.rel (0) target = $region29
  $region28: #{vgae_forward.1} parent=0 // pred_region
    _
  $region29: #{vgae_forward.1} parent=0 // pred_fallthru
    _

</llo_original>
